<compile_context>
chip_gen: v7x
topology: tpu7x:2x2x1
jax: 0.10.0
libtpu: 0.0.40
codegen_flags: <defaults>
</compile_context>

<pallas_src>
import functools
import numpy as np
import jax
import jax.numpy as jnp
from jax.experimental import pallas as pl
from jax.experimental.pallas import tpu as pltpu


def _round_up(x, m):
    return (x + m - 1) // m * m


def _encoder_lstm_kernel(lengths_ref, emb_ref, w_ih_ref, bias_ref, w_hh_ref,
                         ctx_ref, ht_ref, ct_ref,
                         h_sc, c_sc, gx_sc,
                         *, hidden_pad, steps_per_block, batch_pad):
    """One grid step == `steps_per_block` LSTM time steps (serial recurrence)."""
    chunk = pl.program_id(0)
    H = hidden_pad
    TS = steps_per_block
    B = batch_pad

    @pl.when(chunk == 0)
    def _init():
        h_sc[...] = jnp.zeros_like(h_sc)
        c_sc[...] = jnp.zeros_like(c_sc)

    # ---- per-chunk input projection (off the serial per-step path) ----
    # gx = x @ W_ih^T + (b_ih + b_hh): one (TS*B, E) @ (E, 4*H_pad) GEMM.
    # bf16 MXU operands, f32 accumulation; bias added in f32.
    x = emb_ref[...].reshape(TS * B, -1).astype(jnp.bfloat16)
    w_ih = w_ih_ref[...].astype(jnp.bfloat16)
    gx_sc[...] = (jnp.dot(x, w_ih, preferred_element_type=jnp.float32)
                  + bias_ref[...])

    # Hoisted per-chunk loads (constant across the unrolled step loop).
    w_hh = w_hh_ref[...]                 # (H_pad, 4*H_pad) bf16
    lens = lengths_ref[...]              # (B_pad, 1) int32
    t0 = chunk * TS

    # Statically unrolled serial time loop: amortizes per-grid-step overhead
    # and keeps all gx/ctx indices static (aligned, unmasked loads/stores).
    for s in range(TS):
        h = h_sc[...]
        c = c_sc[...]

        # gates = gx[s] + h @ W_hh^T   -> (B_pad, 4*H_pad), f32 accumulate.
        gates = gx_sc[s * B:(s + 1) * B, :] + jnp.dot(
            h.astype(jnp.bfloat16), w_hh, preferred_element_type=jnp.float32)

        # Gate slices are lane-tile aligned because each gate occupies its own
        # H_pad (= multiple of 128) column block.
        i_g = jax.nn.sigmoid(gates[:, 0 * H:1 * H])
        f_g = jax.nn.sigmoid(gates[:, 1 * H:2 * H])
        g_g = jnp.tanh(gates[:, 2 * H:3 * H])
        o_g = jax.nn.sigmoid(gates[:, 3 * H:4 * H])

        c_new = f_g * c + i_g * g_g
        h_new = o_g * jnp.tanh(c_new)

        # pack_padded_sequence semantics: freeze state once t >= lengths[b];
        # ctx is zero past each sequence's length. Padded batch rows have
        # length 0, so they stay zero. Broadcast the mask once and reuse it
        # for all three selects (JAX does not CSE broadcast_in_dim).
        valid = jnp.broadcast_to((t0 + s) < lens, h.shape)   # (B_pad, H_pad) bool
        h_sc[...] = jnp.where(valid, h_new, h)
        c_sc[...] = jnp.where(valid, c_new, c)
        ctx_ref[s] = jnp.where(valid, h_new, 0.0).astype(ctx_ref.dtype)

    # h_t / c_t use constant-index output blocks: the VMEM block is resident
    # across the whole grid and written back to HBM only after the final grid
    # step, so writing them only under this pl.when is correct.
    # (Do NOT change their index_map without revisiting this.)
    @pl.when(chunk == pl.num_programs(0) - 1)
    def _finalize():
        ht_ref[...] = h_sc[...].astype(ht_ref.dtype)
        ct_ref[...] = c_sc[...].astype(ct_ref.dtype)


def encoder_lstm_forward(inputs, lengths, params, *, steps_per_block=16,
                         vmem_limit_bytes=None):
    """inputs: (B, T) int32 vocab indices, lengths: (B,) int32."""
    B, T = inputs.shape
    emb_table = params["embedding"]                    # (V, E)
    E = emb_table.shape[1]
    H = params["w_hh"].shape[1]                        # w_hh: (4H, H)

    B_pad = _round_up(B, 8)                            # sublane multiple
    H_pad = _round_up(H, 128)                          # lane multiple
    steps_per_block = int(max(1, min(steps_per_block, T)))   # avoid wasted padded steps
    T_pad = _round_up(T, steps_per_block)
    num_chunks = T_pad // steps_per_block

    # ---- glue (XLA): embedding gather directly in time-major layout;
    #      dropout == identity (eval mode). ----
    inputs_tm = jnp.transpose(inputs)                  # (T, B) -- tiny int transpose
    embeds_tm = jnp.take(emb_table, inputs_tm, axis=0)  # (T, B, E) f32
    embeds_tm = jnp.pad(embeds_tm, ((0, T_pad - T), (0, B_pad - B), (0, 0)))

    # ---- weight prep: per-gate zero padding H -> H_pad so gate slices stay on
    #      128-lane boundaries; row-vector convention y = x @ W^T.
    #      W_hh^T is stored bf16 (halves VMEM residency + MXU streaming). ----
    def pad_gate_rows(w):                              # (4H, X) -> (4*H_pad, X)
        X = w.shape[1]
        w4 = w.reshape(4, H, X)
        return jnp.pad(w4, ((0, 0), (0, H_pad - H), (0, 0))).reshape(4 * H_pad, X)

    w_ih_t = jnp.transpose(pad_gate_rows(params["w_ih"]))             # (E, 4*H_pad) f32
    w_hh_t = jnp.transpose(
        jnp.pad(pad_gate_rows(params["w_hh"]), ((0, 0), (0, H_pad - H)))
    ).astype(jnp.bfloat16)                                            # (H_pad, 4*H_pad) bf16
    bias_p = jnp.pad((params["b_ih"] + params["b_hh"]).reshape(4, H),
                     ((0, 0), (0, H_pad - H))).reshape(1, 4 * H_pad)  # (1, 4*H_pad) f32

    lengths_2d = jnp.pad(lengths.astype(jnp.int32),
                         (0, B_pad - B)).reshape(B_pad, 1)

    kernel = functools.partial(_encoder_lstm_kernel,
                               hidden_pad=H_pad,
                               steps_per_block=steps_per_block,
                               batch_pad=B_pad)

    out_shapes = (
        jax.ShapeDtypeStruct((T_pad, B_pad, H_pad), jnp.float32),  # ctx (time-major)
        jax.ShapeDtypeStruct((B_pad, H_pad), jnp.float32),         # h_t
        jax.ShapeDtypeStruct((B_pad, H_pad), jnp.float32),         # c_t
    )

    grid_spec = pltpu.PrefetchScalarGridSpec(
        num_scalar_prefetch=0,
        grid=(num_chunks,),
        in_specs=[
            pl.BlockSpec((B_pad, 1), lambda c: (0, 0)),                        # lengths
            pl.BlockSpec((steps_per_block, B_pad, E), lambda c: (c, 0, 0)),    # embeds chunk
            pl.BlockSpec((E, 4 * H_pad), lambda c: (0, 0)),                    # W_ih^T
            pl.BlockSpec((1, 4 * H_pad), lambda c: (0, 0)),                    # b_ih + b_hh
            pl.BlockSpec((H_pad, 4 * H_pad), lambda c: (0, 0)),                # W_hh^T (bf16)
        ],
        out_specs=[
            pl.BlockSpec((steps_per_block, B_pad, H_pad), lambda c: (c, 0, 0)),  # ctx chunk
            pl.BlockSpec((B_pad, H_pad), lambda c: (0, 0)),                      # h_t
            pl.BlockSpec((B_pad, H_pad), lambda c: (0, 0)),                      # c_t
        ],
        scratch_shapes=[
            pltpu.VMEM((B_pad, H_pad), jnp.float32),                             # h carry
            pltpu.VMEM((B_pad, H_pad), jnp.float32),                             # c carry
            pltpu.VMEM((steps_per_block * B_pad, 4 * H_pad), jnp.float32),       # gx chunk
        ],
    )

    # NOTE(perf, v7x): further options not applied here to stay generation-
    # agnostic: (a) a leading batch-parallel grid axis (needs B_pad >= 16) with
    # dimension_semantics=("parallel", "arbitrary") to use both TensorCores,
    # and (b) single-buffering the constant weight blocks. bf16 W_hh + dropping
    # the e2d projection already keep VMEM well inside the v7x budget.
    ctx_tm, ht, ct = pl.pallas_call(
        kernel,
        out_shape=out_shapes,
        grid_spec=grid_spec,
        compiler_params=pltpu.CompilerParams(
            dimension_semantics=("arbitrary",),        # time axis is serial
            vmem_limit_bytes=vmem_limit_bytes),
    )(lengths_2d, embeds_tm, w_ih_t, bias_p, w_hh_t)

    # ---- glue (XLA): trim padding; encoder2decoder is a single tiny GEMM
    #      executed once, so it lives outside the kernel (frees VMEM). ----
    ctx = jnp.transpose(ctx_tm[:T, :B, :H], (1, 0, 2))   # (B, T, H), batch-first
    h_t = ht[:B, :H]
    c_t = ct[:B, :H]
    decoder_init = jnp.tanh(h_t @ jnp.transpose(params["w_e2d"]) + params["b_e2d"])
    return ctx, decoder_init, c_t


def _reference_forward(inputs, lengths, params):
    """Pure numpy reference of the same semantics (for verification)."""
    emb = np.asarray(params["embedding"])[np.asarray(inputs)]   # (B,T,E)
    B, T, E = emb.shape
    w_ih = np.asarray(params["w_ih"]); w_hh = np.asarray(params["w_hh"])
    b = np.asarray(params["b_ih"]) + np.asarray(params["b_hh"])
    H = w_hh.shape[1]
    h = np.zeros((B, H), np.float32); c = np.zeros((B, H), np.float32)
    ctx = np.zeros((B, T, H), np.float32)
    lens = np.asarray(lengths)
    for t in range(T):
        x = emb[:, t]
        gates = x @ w_ih.T + h @ w_hh.T + b
        i = 1.0 / (1.0 + np.exp(-gates[:, 0 * H:1 * H]))
        f = 1.0 / (1.0 + np.exp(-gates[:, 1 * H:2 * H]))
        g = np.tanh(gates[:, 2 * H:3 * H])
        o = 1.0 / (1.0 + np.exp(-gates[:, 3 * H:4 * H]))
        c_new = f * c + i * g
        h_new = o * np.tanh(c_new)
        valid = (t < lens)[:, None]
        h = np.where(valid, h_new, h)
        c = np.where(valid, c_new, c)
        ctx[:, t] = np.where(valid, h_new, 0.0)
    dec = np.tanh(h @ np.asarray(params["w_e2d"]).T + np.asarray(params["b_e2d"]))
    return ctx, dec, c


def make_params(key, vocab_size, embedding_size, hidden_size, padding_idx):
    ks = jax.random.split(key, 7)
    def u(k, shape, scale=0.1):
        return jax.random.uniform(k, shape, jnp.float32, -scale, scale)
    emb = u(ks[0], (vocab_size, embedding_size), 1.0)
    emb = emb.at[padding_idx].set(0.0)
    return {
        "embedding": emb,
        "w_ih": u(ks[1], (4 * hidden_size, embedding_size)),
        "w_hh": u(ks[2], (4 * hidden_size, hidden_size)),
        "b_ih": u(ks[3], (4 * hidden_size,)),
        "b_hh": u(ks[4], (4 * hidden_size,)),
        "w_e2d": u(ks[5], (hidden_size, hidden_size)),
        "b_e2d": u(ks[6], (hidden_size,)),
    }


if __name__ == "__main__":
    VOCAB, EMB, HID, PAD = 100, 32, 32, 0
    B, T = 2, 8

    key = jax.random.PRNGKey(0)
    k_params, k_tok = jax.random.split(key)
    params = make_params(k_params, VOCAB, EMB, HID, PAD)

    tokens = jax.random.randint(k_tok, (B, T), 1, VOCAB, dtype=jnp.int32)
    lengths = jnp.array([T, 5], dtype=jnp.int32)   # sorted descending (pack_padded_sequence)
    # zero out padded token positions like a real padded batch
    pos = jnp.arange(T)[None, :]
    tokens = jnp.where(pos < lengths[:, None], tokens, PAD)

    ctx, decoder_init, c_t = encoder_lstm_forward(tokens, lengths, params)
    jax.block_until_ready((ctx, decoder_init, c_t))

    ctx_r, dec_r, c_r = _reference_forward(tokens, lengths, params)
    # bf16 MXU operands (f32 accumulation) accumulate ~1e-3-level drift over T
    # steps vs the f32 numpy reference, so tolerances are loosened accordingly.
    np.testing.assert_allclose(np.asarray(ctx), ctx_r, atol=1e-2, rtol=1e-2)
    np.testing.assert_allclose(np.asarray(decoder_init), dec_r, atol=1e-2, rtol=1e-2)
    np.testing.assert_allclose(np.asarray(c_t), c_r, atol=1e-2, rtol=1e-2)

    print("KERNEL_OK")
</pallas_src>

<mosaic_0001>
module attributes {stable_mosaic.version = 11 : i64} {
  func.func @_encoder_lstm_kernel(%arg0: i32, %arg1: memref<8x1xi32, #tpu.memory_space<vmem>>, %arg2: memref<8x8x32xf32, #tpu.memory_space<vmem>>, %arg3: memref<32x512xf32, #tpu.memory_space<vmem>>, %arg4: memref<1x512xf32, #tpu.memory_space<vmem>>, %arg5: memref<128x512xbf16, #tpu.memory_space<vmem>>, %arg6: memref<8x8x128xf32, #tpu.memory_space<vmem>>, %arg7: memref<8x128xf32, #tpu.memory_space<vmem>>, %arg8: memref<8x128xf32, #tpu.memory_space<vmem>>, %arg9: memref<8x128xf32, #tpu.memory_space<vmem>>, %arg10: memref<8x128xf32, #tpu.memory_space<vmem>>, %arg11: memref<64x512xf32, #tpu.memory_space<vmem>>) attributes {dimension_semantics = [#tpu.dimension_semantics<arbitrary>], iteration_bounds = array<i64: 1>, scalar_prefetch = 0 : i64, scratch_operands = 3 : i64, tpu.core_type = #tpu.core_type<tc>, window_params = [{pipeline_mode = #tpu.pipeline_mode<synchronous>, transform_indices = @transform_0, window_bounds = array<i64: 8, 1>}, {transform_indices = @transform_1, window_bounds = array<i64: 8, 8, 32>}, {pipeline_mode = #tpu.pipeline_mode<synchronous>, transform_indices = @transform_2, window_bounds = array<i64: 32, 512>}, {pipeline_mode = #tpu.pipeline_mode<synchronous>, transform_indices = @transform_3, window_bounds = array<i64: 1, 512>}, {pipeline_mode = #tpu.pipeline_mode<synchronous>, transform_indices = @transform_4, window_bounds = array<i64: 128, 512>}, {transform_indices = @transform_5, window_bounds = array<i64: 8, 8, 128>}, {pipeline_mode = #tpu.pipeline_mode<synchronous>, transform_indices = @transform_6, window_bounds = array<i64: 8, 128>}, {pipeline_mode = #tpu.pipeline_mode<synchronous>, transform_indices = @transform_7, window_bounds = array<i64: 8, 128>}]} {
    %c0_i32 = arith.constant 0 : i32
    %0 = arith.cmpi eq, %arg0, %c0_i32 : i32
    %1 = arith.extui %0 : i1 to i32
    %c0_i32_0 = arith.constant 0 : i32
    %2 = arith.cmpi ne, %1, %c0_i32_0 : i32
    scf.if %2 {
      %cst_146 = arith.constant 0.000000e+00 : f32
      %379 = vector.broadcast %cst_146 : f32 to vector<8x128xf32>
      %c0_147 = arith.constant 0 : index
      %c0_148 = arith.constant 0 : index
      %380 = vector.load %arg9[%c0_147, %c0_148] : memref<8x128xf32, #tpu.memory_space<vmem>>, vector<8x128xf32>
      tpu.vector_store %arg9[%c0_147, %c0_148], %379 {strides = array<i32>} : memref<8x128xf32, #tpu.memory_space<vmem>>, vector<8x128xf32>,
      %cst_149 = arith.constant 0.000000e+00 : f32
      %381 = vector.broadcast %cst_149 : f32 to vector<8x128xf32>
      %c0_150 = arith.constant 0 : index
      %c0_151 = arith.constant 0 : index
      %382 = vector.load %arg10[%c0_150, %c0_151] : memref<8x128xf32, #tpu.memory_space<vmem>>, vector<8x128xf32>
      tpu.vector_store %arg10[%c0_150, %c0_151], %381 {strides = array<i32>} : memref<8x128xf32, #tpu.memory_space<vmem>>, vector<8x128xf32>,
    } else {
    }
    %c0 = arith.constant 0 : index
    %c0_1 = arith.constant 0 : index
    %c0_2 = arith.constant 0 : index
    %3 = vector.load %arg2[%c0, %c0_1, %c0_2] : memref<8x8x32xf32, #tpu.memory_space<vmem>>, vector<8x8x32xf32>
    %4 = vector.shape_cast %3 : vector<8x8x32xf32> to vector<64x32xf32>
    %5 = arith.truncf %4 : vector<64x32xf32> to vector<64x32xbf16>
    %c0_3 = arith.constant 0 : index
    %c0_4 = arith.constant 0 : index
    %6 = vector.load %arg3[%c0_3, %c0_4] : memref<32x512xf32, #tpu.memory_space<vmem>>, vector<32x512xf32>
    %7 = arith.truncf %6 : vector<32x512xf32> to vector<32x512xbf16>
    %cst = arith.constant dense<0.000000e+00> : vector<64x512xf32>
    %8 = tpu.matmul %5, %7, %cst {dimension_numbers = #tpu.dot_dimension_numbers<[1], [0], [0], [1], [0, 0, 1, 1], [], []>} : vector<64x32xbf16>, vector<32x512xbf16>, vector<64x512xf32> -> vector<64x512xf32>
    %c0_5 = arith.constant 0 : index
    %c0_6 = arith.constant 0 : index
    %9 = vector.load %arg4[%c0_5, %c0_6] : memref<1x512xf32, #tpu.memory_space<vmem>>, vector<1x512xf32>
    %10 = vector.broadcast %9 : vector<1x512xf32> to vector<64x512xf32>
    %11 = arith.addf %8, %10 : vector<64x512xf32>
    %c0_7 = arith.constant 0 : index
    %c0_8 = arith.constant 0 : index
    %12 = vector.load %arg11[%c0_7, %c0_8] : memref<64x512xf32, #tpu.memory_space<vmem>>, vector<64x512xf32>
    tpu.vector_store %arg11[%c0_7, %c0_8], %11 {strides = array<i32>} : memref<64x512xf32, #tpu.memory_space<vmem>>, vector<64x512xf32>,
    %c0_9 = arith.constant 0 : index
    %c0_10 = arith.constant 0 : index
    %13 = vector.load %arg5[%c0_9, %c0_10] : memref<128x512xbf16, #tpu.memory_space<vmem>>, vector<128x512xbf16>
    %c0_11 = arith.constant 0 : index
    %c0_12 = arith.constant 0 : index
    %14 = vector.load %arg1[%c0_11, %c0_12] : memref<8x1xi32, #tpu.memory_space<vmem>>, vector<8x1xi32>
    %c8_i32 = arith.constant 8 : i32
    %15 = arith.muli %arg0, %c8_i32 : i32
    %c0_13 = arith.constant 0 : index
    %c0_14 = arith.constant 0 : index
    %16 = vector.load %arg9[%c0_13, %c0_14] : memref<8x128xf32, #tpu.memory_space<vmem>>, vector<8x128xf32>
    %c0_15 = arith.constant 0 : index
    %c0_16 = arith.constant 0 : index
    %17 = vector.load %arg10[%c0_15, %c0_16] : memref<8x128xf32, #tpu.memory_space<vmem>>, vector<8x128xf32>
    %c0_17 = arith.constant 0 : index
    %c0_18 = arith.constant 0 : index
    %18 = vector.load %arg11[%c0_17, %c0_18] : memref<64x512xf32, #tpu.memory_space<vmem>>, vector<8x512xf32>
    %19 = arith.truncf %16 : vector<8x128xf32> to vector<8x128xbf16>
    %cst_19 = arith.constant dense<0.000000e+00> : vector<8x512xf32>
    %20 = tpu.matmul %19, %13, %cst_19 {dimension_numbers = #tpu.dot_dimension_numbers<[1], [0], [0], [1], [0, 0, 1, 1], [], []>} : vector<8x128xbf16>, vector<128x512xbf16>, vector<8x512xf32> -> vector<8x512xf32>
    %21 = arith.addf %18, %20 : vector<8x512xf32>
    %22 = vector.extract_strided_slice %21 {offsets = [0, 0], sizes = [8, 128], strides = [1, 1]} : vector<8x512xf32> to vector<8x128xf32>
    %23 = arith.negf %22 : vector<8x128xf32>
    %24 = math.exp %23 : vector<8x128xf32>
    %cst_20 = arith.constant 1.000000e+00 : f32
    %25 = vector.broadcast %cst_20 : f32 to vector<8x128xf32>
    %26 = arith.addf %25, %24 : vector<8x128xf32>
    %27 = arith.divf %25, %26 : vector<8x128xf32>
    %28 = vector.extract_strided_slice %21 {offsets = [0, 128], sizes = [8, 128], strides = [1, 1]} : vector<8x512xf32> to vector<8x128xf32>
    %29 = arith.negf %28 : vector<8x128xf32>
    %30 = math.exp %29 : vector<8x128xf32>
    %cst_21 = arith.constant 1.000000e+00 : f32
    %31 = vector.broadcast %cst_21 : f32 to vector<8x128xf32>
    %32 = arith.addf %31, %30 : vector<8x128xf32>
    %33 = arith.divf %31, %32 : vector<8x128xf32>
    %34 = vector.extract_strided_slice %21 {offsets = [0, 256], sizes = [8, 128], strides = [1, 1]} : vector<8x512xf32> to vector<8x128xf32>
    %35 = math.tanh %34 : vector<8x128xf32>
    %36 = vector.extract_strided_slice %21 {offsets = [0, 384], sizes = [8, 128], strides = [1, 1]} : vector<8x512xf32> to vector<8x128xf32>
    %37 = arith.negf %36 : vector<8x128xf32>
    %38 = math.exp %37 : vector<8x128xf32>
    %cst_22 = arith.constant 1.000000e+00 : f32
    %39 = vector.broadcast %cst_22 : f32 to vector<8x128xf32>
    %40 = arith.addf %39, %38 : vector<8x128xf32>
    %41 = arith.divf %39, %40 : vector<8x128xf32>
    %42 = arith.mulf %33, %17 : vector<8x128xf32>
    %43 = arith.mulf %27, %35 : vector<8x128xf32>
    %44 = arith.addf %42, %43 : vector<8x128xf32>
    %45 = math.tanh %44 : vector<8x128xf32>
    %46 = arith.mulf %41, %45 : vector<8x128xf32>
    %c0_i32_23 = arith.constant 0 : i32
    %47 = arith.addi %15, %c0_i32_23 : i32
    %48 = vector.broadcast %47 : i32 to vector<8x1xi32>
    %49 = arith.cmpi slt, %48, %14 : vector<8x1xi32>
    %50 = vector.shape_cast %49 : vector<8x1xi1> to vector<8x1xi1>
    %51 = vector.broadcast %50 : vector<8x1xi1> to vector<8x128xi1>
    %52 = arith.select %51, %46, %16 : vector<8x128xi1>, vector<8x128xf32>
    %c0_24 = arith.constant 0 : index
    %c0_25 = arith.constant 0 : index
    %53 = vector.load %arg9[%c0_24, %c0_25] : memref<8x128xf32, #tpu.memory_space<vmem>>, vector<8x128xf32>
    tpu.vector_store %arg9[%c0_24, %c0_25], %52 {strides = array<i32>} : memref<8x128xf32, #tpu.memory_space<vmem>>, vector<8x128xf32>,
    %54 = arith.select %51, %44, %17 : vector<8x128xi1>, vector<8x128xf32>
    %c0_26 = arith.constant 0 : index
    %c0_27 = arith.constant 0 : index
    %55 = vector.load %arg10[%c0_26, %c0_27] : memref<8x128xf32, #tpu.memory_space<vmem>>, vector<8x128xf32>
    tpu.vector_store %arg10[%c0_26, %c0_27], %54 {strides = array<i32>} : memref<8x128xf32, #tpu.memory_space<vmem>>, vector<8x128xf32>,
    %cst_28 = arith.constant 0.000000e+00 : f32
    %56 = vector.broadcast %cst_28 : f32 to vector<8x128xf32>
    %57 = arith.select %51, %46, %56 : vector<8x128xi1>, vector<8x128xf32>
    %c0_29 = arith.constant 0 : index
    %c0_30 = arith.constant 0 : index
    %c0_31 = arith.constant 0 : index
    %58 = vector.load %arg6[%c0_29, %c0_30, %c0_31] : memref<8x8x128xf32, #tpu.memory_space<vmem>>, vector<1x8x128xf32>
    %59 = vector.shape_cast %58 : vector<1x8x128xf32> to vector<8x128xf32>
    %60 = vector.shape_cast %57 : vector<8x128xf32> to vector<1x8x128xf32>
    tpu.vector_store %arg6[%c0_29, %c0_30, %c0_31], %60 {strides = array<i32>} : memref<8x8x128xf32, #tpu.memory_space<vmem>>, vector<1x8x128xf32>,
    %c0_32 = arith.constant 0 : index
    %c0_33 = arith.constant 0 : index
    %61 = vector.load %arg9[%c0_32, %c0_33] : memref<8x128xf32, #tpu.memory_space<vmem>>, vector<8x128xf32>
    %c0_34 = arith.constant 0 : index
    %c0_35 = arith.constant 0 : index
    %62 = vector.load %arg10[%c0_34, %c0_35] : memref<8x128xf32, #tpu.memory_space<vmem>>, vector<8x128xf32>
    %c8 = arith.constant 8 : index
    %c0_36 = arith.constant 0 : index
    %63 = vector.load %arg11[%c8, %c0_36] : memref<64x512xf32, #tpu.memory_space<vmem>>, vector<8x512xf32>
    %64 = arith.truncf %61 : vector<8x128xf32> to vector<8x128xbf16>
    %cst_37 = arith.constant dense<0.000000e+00> : vector<8x512xf32>
    %65 = tpu.matmul %64, %13, %cst_37 {dimension_numbers = #tpu.dot_dimension_numbers<[1], [0], [0], [1], [0, 0, 1, 1], [], []>} : vector<8x128xbf16>, vector<128x512xbf16>, vector<8x512xf32> -> vector<8x512xf32>
    %66 = arith.addf %63, %65 : vector<8x512xf32>
    %67 = vector.extract_strided_slice %66 {offsets = [0, 0], sizes = [8, 128], strides = [1, 1]} : vector<8x512xf32> to vector<8x128xf32>
    %68 = arith.negf %67 : vector<8x128xf32>
    %69 = math.exp %68 : vector<8x128xf32>
    %cst_38 = arith.constant 1.000000e+00 : f32
    %70 = vector.broadcast %cst_38 : f32 to vector<8x128xf32>
    %71 = arith.addf %70, %69 : vector<8x128xf32>
    %72 = arith.divf %70, %71 : vector<8x128xf32>
    %73 = vector.extract_strided_slice %66 {offsets = [0, 128], sizes = [8, 128], strides = [1, 1]} : vector<8x512xf32> to vector<8x128xf32>
    %74 = arith.negf %73 : vector<8x128xf32>
    %75 = math.exp %74 : vector<8x128xf32>
    %cst_39 = arith.constant 1.000000e+00 : f32
    %76 = vector.broadcast %cst_39 : f32 to vector<8x128xf32>
    %77 = arith.addf %76, %75 : vector<8x128xf32>
    %78 = arith.divf %76, %77 : vector<8x128xf32>
    %79 = vector.extract_strided_slice %66 {offsets = [0, 256], sizes = [8, 128], strides = [1, 1]} : vector<8x512xf32> to vector<8x128xf32>
    %80 = math.tanh %79 : vector<8x128xf32>
    %81 = vector.extract_strided_slice %66 {offsets = [0, 384], sizes = [8, 128], strides = [1, 1]} : vector<8x512xf32> to vector<8x128xf32>
    %82 = arith.negf %81 : vector<8x128xf32>
    %83 = math.exp %82 : vector<8x128xf32>
    %cst_40 = arith.constant 1.000000e+00 : f32
    %84 = vector.broadcast %cst_40 : f32 to vector<8x128xf32>
    %85 = arith.addf %84, %83 : vector<8x128xf32>
    %86 = arith.divf %84, %85 : vector<8x128xf32>
    %87 = arith.mulf %78, %62 : vector<8x128xf32>
    %88 = arith.mulf %72, %80 : vector<8x128xf32>
    %89 = arith.addf %87, %88 : vector<8x128xf32>
    %90 = math.tanh %89 : vector<8x128xf32>
    %91 = arith.mulf %86, %90 : vector<8x128xf32>
    %c1_i32 = arith.constant 1 : i32
    %92 = arith.addi %15, %c1_i32 : i32
    %93 = vector.broadcast %92 : i32 to vector<8x1xi32>
    %94 = arith.cmpi slt, %93, %14 : vector<8x1xi32>
    %95 = vector.shape_cast %94 : vector<8x1xi1> to vector<8x1xi1>
    %96 = vector.broadcast %95 : vector<8x1xi1> to vector<8x128xi1>
    %97 = arith.select %96, %91, %61 : vector<8x128xi1>, vector<8x128xf32>
    %c0_41 = arith.constant 0 : index
    %c0_42 = arith.constant 0 : index
    %98 = vector.load %arg9[%c0_41, %c0_42] : memref<8x128xf32, #tpu.memory_space<vmem>>, vector<8x128xf32>
    tpu.vector_store %arg9[%c0_41, %c0_42], %97 {strides = array<i32>} : memref<8x128xf32, #tpu.memory_space<vmem>>, vector<8x128xf32>,
    %99 = arith.select %96, %89, %62 : vector<8x128xi1>, vector<8x128xf32>
    %c0_43 = arith.constant 0 : index
    %c0_44 = arith.constant 0 : index
    %100 = vector.load %arg10[%c0_43, %c0_44] : memref<8x128xf32, #tpu.memory_space<vmem>>, vector<8x128xf32>
    tpu.vector_store %arg10[%c0_43, %c0_44], %99 {strides = array<i32>} : memref<8x128xf32, #tpu.memory_space<vmem>>, vector<8x128xf32>,
    %cst_45 = arith.constant 0.000000e+00 : f32
    %101 = vector.broadcast %cst_45 : f32 to vector<8x128xf32>
    %102 = arith.select %96, %91, %101 : vector<8x128xi1>, vector<8x128xf32>
    %c1 = arith.constant 1 : index
    %c0_46 = arith.constant 0 : index
    %c0_47 = arith.constant 0 : index
    %103 = vector.load %arg6[%c1, %c0_46, %c0_47] : memref<8x8x128xf32, #tpu.memory_space<vmem>>, vector<1x8x128xf32>
    %104 = vector.shape_cast %103 : vector<1x8x128xf32> to vector<8x128xf32>
    %105 = vector.shape_cast %102 : vector<8x128xf32> to vector<1x8x128xf32>
    tpu.vector_store %arg6[%c1, %c0_46, %c0_47], %105 {strides = array<i32>} : memref<8x8x128xf32, #tpu.memory_space<vmem>>, vector<1x8x128xf32>,
    %c0_48 = arith.constant 0 : index
    %c0_49 = arith.constant 0 : index
    %106 = vector.load %arg9[%c0_48, %c0_49] : memref<8x128xf32, #tpu.memory_space<vmem>>, vector<8x128xf32>
    %c0_50 = arith.constant 0 : index
    %c0_51 = arith.constant 0 : index
    %107 = vector.load %arg10[%c0_50, %c0_51] : memref<8x128xf32, #tpu.memory_space<vmem>>, vector<8x128xf32>
    %c16 = arith.constant 16 : index
    %c0_52 = arith.constant 0 : index
    %108 = vector.load %arg11[%c16, %c0_52] : memref<64x512xf32, #tpu.memory_space<vmem>>, vector<8x512xf32>
    %109 = arith.truncf %106 : vector<8x128xf32> to vector<8x128xbf16>
    %cst_53 = arith.constant dense<0.000000e+00> : vector<8x512xf32>
    %110 = tpu.matmul %109, %13, %cst_53 {dimension_numbers = #tpu.dot_dimension_numbers<[1], [0], [0], [1], [0, 0, 1, 1], [], []>} : vector<8x128xbf16>, vector<128x512xbf16>, vector<8x512xf32> -> vector<8x512xf32>
    %111 = arith.addf %108, %110 : vector<8x512xf32>
    %112 = vector.extract_strided_slice %111 {offsets = [0, 0], sizes = [8, 128], strides = [1, 1]} : vector<8x512xf32> to vector<8x128xf32>
    %113 = arith.negf %112 : vector<8x128xf32>
    %114 = math.exp %113 : vector<8x128xf32>
    %cst_54 = arith.constant 1.000000e+00 : f32
    %115 = vector.broadcast %cst_54 : f32 to vector<8x128xf32>
    %116 = arith.addf %115, %114 : vector<8x128xf32>
    %117 = arith.divf %115, %116 : vector<8x128xf32>
    %118 = vector.extract_strided_slice %111 {offsets = [0, 128], sizes = [8, 128], strides = [1, 1]} : vector<8x512xf32> to vector<8x128xf32>
    %119 = arith.negf %118 : vector<8x128xf32>
    %120 = math.exp %119 : vector<8x128xf32>
    %cst_55 = arith.constant 1.000000e+00 : f32
    %121 = vector.broadcast %cst_55 : f32 to vector<8x128xf32>
    %122 = arith.addf %121, %120 : vector<8x128xf32>
    %123 = arith.divf %121, %122 : vector<8x128xf32>
    %124 = vector.extract_strided_slice %111 {offsets = [0, 256], sizes = [8, 128], strides = [1, 1]} : vector<8x512xf32> to vector<8x128xf32>
    %125 = math.tanh %124 : vector<8x128xf32>
    %126 = vector.extract_strided_slice %111 {offsets = [0, 384], sizes = [8, 128], strides = [1, 1]} : vector<8x512xf32> to vector<8x128xf32>
    %127 = arith.negf %126 : vector<8x128xf32>
    %128 = math.exp %127 : vector<8x128xf32>
    %cst_56 = arith.constant 1.000000e+00 : f32
    %129 = vector.broadcast %cst_56 : f32 to vector<8x128xf32>
    %130 = arith.addf %129, %128 : vector<8x128xf32>
    %131 = arith.divf %129, %130 : vector<8x128xf32>
    %132 = arith.mulf %123, %107 : vector<8x128xf32>
    %133 = arith.mulf %117, %125 : vector<8x128xf32>
    %134 = arith.addf %132, %133 : vector<8x128xf32>
    %135 = math.tanh %134 : vector<8x128xf32>
    %136 = arith.mulf %131, %135 : vector<8x128xf32>
    %c2_i32 = arith.constant 2 : i32
    %137 = arith.addi %15, %c2_i32 : i32
    %138 = vector.broadcast %137 : i32 to vector<8x1xi32>
    %139 = arith.cmpi slt, %138, %14 : vector<8x1xi32>
    %140 = vector.shape_cast %139 : vector<8x1xi1> to vector<8x1xi1>
    %141 = vector.broadcast %140 : vector<8x1xi1> to vector<8x128xi1>
    %142 = arith.select %141, %136, %106 : vector<8x128xi1>, vector<8x128xf32>
    %c0_57 = arith.constant 0 : index
    %c0_58 = arith.constant 0 : index
    %143 = vector.load %arg9[%c0_57, %c0_58] : memref<8x128xf32, #tpu.memory_space<vmem>>, vector<8x128xf32>
    tpu.vector_store %arg9[%c0_57, %c0_58], %142 {strides = array<i32>} : memref<8x128xf32, #tpu.memory_space<vmem>>, vector<8x128xf32>,
    %144 = arith.select %141, %134, %107 : vector<8x128xi1>, vector<8x128xf32>
    %c0_59 = arith.constant 0 : index
    %c0_60 = arith.constant 0 : index
    %145 = vector.load %arg10[%c0_59, %c0_60] : memref<8x128xf32, #tpu.memory_space<vmem>>, vector<8x128xf32>
    tpu.vector_store %arg10[%c0_59, %c0_60], %144 {strides = array<i32>} : memref<8x128xf32, #tpu.memory_space<vmem>>, vector<8x128xf32>,
    %cst_61 = arith.constant 0.000000e+00 : f32
    %146 = vector.broadcast %cst_61 : f32 to vector<8x128xf32>
    %147 = arith.select %141, %136, %146 : vector<8x128xi1>, vector<8x128xf32>
    %c2 = arith.constant 2 : index
    %c0_62 = arith.constant 0 : index
    %c0_63 = arith.constant 0 : index
    %148 = vector.load %arg6[%c2, %c0_62, %c0_63] : memref<8x8x128xf32, #tpu.memory_space<vmem>>, vector<1x8x128xf32>
    %149 = vector.shape_cast %148 : vector<1x8x128xf32> to vector<8x128xf32>
    %150 = vector.shape_cast %147 : vector<8x128xf32> to vector<1x8x128xf32>
    tpu.vector_store %arg6[%c2, %c0_62, %c0_63], %150 {strides = array<i32>} : memref<8x8x128xf32, #tpu.memory_space<vmem>>, vector<1x8x128xf32>,
    %c0_64 = arith.constant 0 : index
    %c0_65 = arith.constant 0 : index
    %151 = vector.load %arg9[%c0_64, %c0_65] : memref<8x128xf32, #tpu.memory_space<vmem>>, vector<8x128xf32>
    %c0_66 = arith.constant 0 : index
    %c0_67 = arith.constant 0 : index
    %152 = vector.load %arg10[%c0_66, %c0_67] : memref<8x128xf32, #tpu.memory_space<vmem>>, vector<8x128xf32>
    %c24 = arith.constant 24 : index
    %c0_68 = arith.constant 0 : index
    %153 = vector.load %arg11[%c24, %c0_68] : memref<64x512xf32, #tpu.memory_space<vmem>>, vector<8x512xf32>
    %154 = arith.truncf %151 : vector<8x128xf32> to vector<8x128xbf16>
    %cst_69 = arith.constant dense<0.000000e+00> : vector<8x512xf32>
    %155 = tpu.matmul %154, %13, %cst_69 {dimension_numbers = #tpu.dot_dimension_numbers<[1], [0], [0], [1], [0, 0, 1, 1], [], []>} : vector<8x128xbf16>, vector<128x512xbf16>, vector<8x512xf32> -> vector<8x512xf32>
    %156 = arith.addf %153, %155 : vector<8x512xf32>
    %157 = vector.extract_strided_slice %156 {offsets = [0, 0], sizes = [8, 128], strides = [1, 1]} : vector<8x512xf32> to vector<8x128xf32>
    %158 = arith.negf %157 : vector<8x128xf32>
    %159 = math.exp %158 : vector<8x128xf32>
    %cst_70 = arith.constant 1.000000e+00 : f32
    %160 = vector.broadcast %cst_70 : f32 to vector<8x128xf32>
    %161 = arith.addf %160, %159 : vector<8x128xf32>
    %162 = arith.divf %160, %161 : vector<8x128xf32>
    %163 = vector.extract_strided_slice %156 {offsets = [0, 128], sizes = [8, 128], strides = [1, 1]} : vector<8x512xf32> to vector<8x128xf32>
    %164 = arith.negf %163 : vector<8x128xf32>
    %165 = math.exp %164 : vector<8x128xf32>
    %cst_71 = arith.constant 1.000000e+00 : f32
    %166 = vector.broadcast %cst_71 : f32 to vector<8x128xf32>
    %167 = arith.addf %166, %165 : vector<8x128xf32>
    %168 = arith.divf %166, %167 : vector<8x128xf32>
    %169 = vector.extract_strided_slice %156 {offsets = [0, 256], sizes = [8, 128], strides = [1, 1]} : vector<8x512xf32> to vector<8x128xf32>
    %170 = math.tanh %169 : vector<8x128xf32>
    %171 = vector.extract_strided_slice %156 {offsets = [0, 384], sizes = [8, 128], strides = [1, 1]} : vector<8x512xf32> to vector<8x128xf32>
    %172 = arith.negf %171 : vector<8x128xf32>
    %173 = math.exp %172 : vector<8x128xf32>
    %cst_72 = arith.constant 1.000000e+00 : f32
    %174 = vector.broadcast %cst_72 : f32 to vector<8x128xf32>
    %175 = arith.addf %174, %173 : vector<8x128xf32>
    %176 = arith.divf %174, %175 : vector<8x128xf32>
    %177 = arith.mulf %168, %152 : vector<8x128xf32>
    %178 = arith.mulf %162, %170 : vector<8x128xf32>
    %179 = arith.addf %177, %178 : vector<8x128xf32>
    %180 = math.tanh %179 : vector<8x128xf32>
    %181 = arith.mulf %176, %180 : vector<8x128xf32>
    %c3_i32 = arith.constant 3 : i32
    %182 = arith.addi %15, %c3_i32 : i32
    %183 = vector.broadcast %182 : i32 to vector<8x1xi32>
    %184 = arith.cmpi slt, %183, %14 : vector<8x1xi32>
    %185 = vector.shape_cast %184 : vector<8x1xi1> to vector<8x1xi1>
    %186 = vector.broadcast %185 : vector<8x1xi1> to vector<8x128xi1>
    %187 = arith.select %186, %181, %151 : vector<8x128xi1>, vector<8x128xf32>
    %c0_73 = arith.constant 0 : index
    %c0_74 = arith.constant 0 : index
    %188 = vector.load %arg9[%c0_73, %c0_74] : memref<8x128xf32, #tpu.memory_space<vmem>>, vector<8x128xf32>
    tpu.vector_store %arg9[%c0_73, %c0_74], %187 {strides = array<i32>} : memref<8x128xf32, #tpu.memory_space<vmem>>, vector<8x128xf32>,
    %189 = arith.select %186, %179, %152 : vector<8x128xi1>, vector<8x128xf32>
    %c0_75 = arith.constant 0 : index
    %c0_76 = arith.constant 0 : index
    %190 = vector.load %arg10[%c0_75, %c0_76] : memref<8x128xf32, #tpu.memory_space<vmem>>, vector<8x128xf32>
    tpu.vector_store %arg10[%c0_75, %c0_76], %189 {strides = array<i32>} : memref<8x128xf32, #tpu.memory_space<vmem>>, vector<8x128xf32>,
    %cst_77 = arith.constant 0.000000e+00 : f32
    %191 = vector.broadcast %cst_77 : f32 to vector<8x128xf32>
    %192 = arith.select %186, %181, %191 : vector<8x128xi1>, vector<8x128xf32>
    %c3 = arith.constant 3 : index
    %c0_78 = arith.constant 0 : index
    %c0_79 = arith.constant 0 : index
    %193 = vector.load %arg6[%c3, %c0_78, %c0_79] : memref<8x8x128xf32, #tpu.memory_space<vmem>>, vector<1x8x128xf32>
    %194 = vector.shape_cast %193 : vector<1x8x128xf32> to vector<8x128xf32>
    %195 = vector.shape_cast %192 : vector<8x128xf32> to vector<1x8x128xf32>
    tpu.vector_store %arg6[%c3, %c0_78, %c0_79], %195 {strides = array<i32>} : memref<8x8x128xf32, #tpu.memory_space<vmem>>, vector<1x8x128xf32>,
    %c0_80 = arith.constant 0 : index
    %c0_81 = arith.constant 0 : index
    %196 = vector.load %arg9[%c0_80, %c0_81] : memref<8x128xf32, #tpu.memory_space<vmem>>, vector<8x128xf32>
    %c0_82 = arith.constant 0 : index
    %c0_83 = arith.constant 0 : index
    %197 = vector.load %arg10[%c0_82, %c0_83] : memref<8x128xf32, #tpu.memory_space<vmem>>, vector<8x128xf32>
    %c32 = arith.constant 32 : index
    %c0_84 = arith.constant 0 : index
    %198 = vector.load %arg11[%c32, %c0_84] : memref<64x512xf32, #tpu.memory_space<vmem>>, vector<8x512xf32>
    %199 = arith.truncf %196 : vector<8x128xf32> to vector<8x128xbf16>
    %cst_85 = arith.constant dense<0.000000e+00> : vector<8x512xf32>
    %200 = tpu.matmul %199, %13, %cst_85 {dimension_numbers = #tpu.dot_dimension_numbers<[1], [0], [0], [1], [0, 0, 1, 1], [], []>} : vector<8x128xbf16>, vector<128x512xbf16>, vector<8x512xf32> -> vector<8x512xf32>
    %201 = arith.addf %198, %200 : vector<8x512xf32>
    %202 = vector.extract_strided_slice %201 {offsets = [0, 0], sizes = [8, 128], strides = [1, 1]} : vector<8x512xf32> to vector<8x128xf32>
    %203 = arith.negf %202 : vector<8x128xf32>
    %204 = math.exp %203 : vector<8x128xf32>
    %cst_86 = arith.constant 1.000000e+00 : f32
    %205 = vector.broadcast %cst_86 : f32 to vector<8x128xf32>
    %206 = arith.addf %205, %204 : vector<8x128xf32>
    %207 = arith.divf %205, %206 : vector<8x128xf32>
    %208 = vector.extract_strided_slice %201 {offsets = [0, 128], sizes = [8, 128], strides = [1, 1]} : vector<8x512xf32> to vector<8x128xf32>
    %209 = arith.negf %208 : vector<8x128xf32>
    %210 = math.exp %209 : vector<8x128xf32>
    %cst_87 = arith.constant 1.000000e+00 : f32
    %211 = vector.broadcast %cst_87 : f32 to vector<8x128xf32>
    %212 = arith.addf %211, %210 : vector<8x128xf32>
    %213 = arith.divf %211, %212 : vector<8x128xf32>
    %214 = vector.extract_strided_slice %201 {offsets = [0, 256], sizes = [8, 128], strides = [1, 1]} : vector<8x512xf32> to vector<8x128xf32>
    %215 = math.tanh %214 : vector<8x128xf32>
    %216 = vector.extract_strided_slice %201 {offsets = [0, 384], sizes = [8, 128], strides = [1, 1]} : vector<8x512xf32> to vector<8x128xf32>
    %217 = arith.negf %216 : vector<8x128xf32>
    %218 = math.exp %217 : vector<8x128xf32>
    %cst_88 = arith.constant 1.000000e+00 : f32
    %219 = vector.broadcast %cst_88 : f32 to vector<8x128xf32>
    %220 = arith.addf %219, %218 : vector<8x128xf32>
    %221 = arith.divf %219, %220 : vector<8x128xf32>
    %222 = arith.mulf %213, %197 : vector<8x128xf32>
    %223 = arith.mulf %207, %215 : vector<8x128xf32>
    %224 = arith.addf %222, %223 : vector<8x128xf32>
    %225 = math.tanh %224 : vector<8x128xf32>
    %226 = arith.mulf %221, %225 : vector<8x128xf32>
    %c4_i32 = arith.constant 4 : i32
    %227 = arith.addi %15, %c4_i32 : i32
    %228 = vector.broadcast %227 : i32 to vector<8x1xi32>
    %229 = arith.cmpi slt, %228, %14 : vector<8x1xi32>
    %230 = vector.shape_cast %229 : vector<8x1xi1> to vector<8x1xi1>
    %231 = vector.broadcast %230 : vector<8x1xi1> to vector<8x128xi1>
    %232 = arith.select %231, %226, %196 : vector<8x128xi1>, vector<8x128xf32>
    %c0_89 = arith.constant 0 : index
    %c0_90 = arith.constant 0 : index
    %233 = vector.load %arg9[%c0_89, %c0_90] : memref<8x128xf32, #tpu.memory_space<vmem>>, vector<8x128xf32>
    tpu.vector_store %arg9[%c0_89, %c0_90], %232 {strides = array<i32>} : memref<8x128xf32, #tpu.memory_space<vmem>>, vector<8x128xf32>,
    %234 = arith.select %231, %224, %197 : vector<8x128xi1>, vector<8x128xf32>
    %c0_91 = arith.constant 0 : index
    %c0_92 = arith.constant 0 : index
    %235 = vector.load %arg10[%c0_91, %c0_92] : memref<8x128xf32, #tpu.memory_space<vmem>>, vector<8x128xf32>
    tpu.vector_store %arg10[%c0_91, %c0_92], %234 {strides = array<i32>} : memref<8x128xf32, #tpu.memory_space<vmem>>, vector<8x128xf32>,
    %cst_93 = arith.constant 0.000000e+00 : f32
    %236 = vector.broadcast %cst_93 : f32 to vector<8x128xf32>
    %237 = arith.select %231, %226, %236 : vector<8x128xi1>, vector<8x128xf32>
    %c4 = arith.constant 4 : index
    %c0_94 = arith.constant 0 : index
    %c0_95 = arith.constant 0 : index
    %238 = vector.load %arg6[%c4, %c0_94, %c0_95] : memref<8x8x128xf32, #tpu.memory_space<vmem>>, vector<1x8x128xf32>
    %239 = vector.shape_cast %238 : vector<1x8x128xf32> to vector<8x128xf32>
    %240 = vector.shape_cast %237 : vector<8x128xf32> to vector<1x8x128xf32>
    tpu.vector_store %arg6[%c4, %c0_94, %c0_95], %240 {strides = array<i32>} : memref<8x8x128xf32, #tpu.memory_space<vmem>>, vector<1x8x128xf32>,
    %c0_96 = arith.constant 0 : index
    %c0_97 = arith.constant 0 : index
    %241 = vector.load %arg9[%c0_96, %c0_97] : memref<8x128xf32, #tpu.memory_space<vmem>>, vector<8x128xf32>
    %c0_98 = arith.constant 0 : index
    %c0_99 = arith.constant 0 : index
    %242 = vector.load %arg10[%c0_98, %c0_99] : memref<8x128xf32, #tpu.memory_space<vmem>>, vector<8x128xf32>
    %c40 = arith.constant 40 : index
    %c0_100 = arith.constant 0 : index
    %243 = vector.load %arg11[%c40, %c0_100] : memref<64x512xf32, #tpu.memory_space<vmem>>, vector<8x512xf32>
    %244 = arith.truncf %241 : vector<8x128xf32> to vector<8x128xbf16>
    %cst_101 = arith.constant dense<0.000000e+00> : vector<8x512xf32>
    %245 = tpu.matmul %244, %13, %cst_101 {dimension_numbers = #tpu.dot_dimension_numbers<[1], [0], [0], [1], [0, 0, 1, 1], [], []>} : vector<8x128xbf16>, vector<128x512xbf16>, vector<8x512xf32> -> vector<8x512xf32>
    %246 = arith.addf %243, %245 : vector<8x512xf32>
    %247 = vector.extract_strided_slice %246 {offsets = [0, 0], sizes = [8, 128], strides = [1, 1]} : vector<8x512xf32> to vector<8x128xf32>
    %248 = arith.negf %247 : vector<8x128xf32>
    %249 = math.exp %248 : vector<8x128xf32>
    %cst_102 = arith.constant 1.000000e+00 : f32
    %250 = vector.broadcast %cst_102 : f32 to vector<8x128xf32>
    %251 = arith.addf %250, %249 : vector<8x128xf32>
    %252 = arith.divf %250, %251 : vector<8x128xf32>
    %253 = vector.extract_strided_slice %246 {offsets = [0, 128], sizes = [8, 128], strides = [1, 1]} : vector<8x512xf32> to vector<8x128xf32>
    %254 = arith.negf %253 : vector<8x128xf32>
    %255 = math.exp %254 : vector<8x128xf32>
    %cst_103 = arith.constant 1.000000e+00 : f32
    %256 = vector.broadcast %cst_103 : f32 to vector<8x128xf32>
    %257 = arith.addf %256, %255 : vector<8x128xf32>
    %258 = arith.divf %256, %257 : vector<8x128xf32>
    %259 = vector.extract_strided_slice %246 {offsets = [0, 256], sizes = [8, 128], strides = [1, 1]} : vector<8x512xf32> to vector<8x128xf32>
    %260 = math.tanh %259 : vector<8x128xf32>
    %261 = vector.extract_strided_slice %246 {offsets = [0, 384], sizes = [8, 128], strides = [1, 1]} : vector<8x512xf32> to vector<8x128xf32>
    %262 = arith.negf %261 : vector<8x128xf32>
    %263 = math.exp %262 : vector<8x128xf32>
    %cst_104 = arith.constant 1.000000e+00 : f32
    %264 = vector.broadcast %cst_104 : f32 to vector<8x128xf32>
    %265 = arith.addf %264, %263 : vector<8x128xf32>
    %266 = arith.divf %264, %265 : vector<8x128xf32>
    %267 = arith.mulf %258, %242 : vector<8x128xf32>
    %268 = arith.mulf %252, %260 : vector<8x128xf32>
    %269 = arith.addf %267, %268 : vector<8x128xf32>
    %270 = math.tanh %269 : vector<8x128xf32>
    %271 = arith.mulf %266, %270 : vector<8x128xf32>
    %c5_i32 = arith.constant 5 : i32
    %272 = arith.addi %15, %c5_i32 : i32
    %273 = vector.broadcast %272 : i32 to vector<8x1xi32>
    %274 = arith.cmpi slt, %273, %14 : vector<8x1xi32>
    %275 = vector.shape_cast %274 : vector<8x1xi1> to vector<8x1xi1>
    %276 = vector.broadcast %275 : vector<8x1xi1> to vector<8x128xi1>
    %277 = arith.select %276, %271, %241 : vector<8x128xi1>, vector<8x128xf32>
    %c0_105 = arith.constant 0 : index
    %c0_106 = arith.constant 0 : index
    %278 = vector.load %arg9[%c0_105, %c0_106] : memref<8x128xf32, #tpu.memory_space<vmem>>, vector<8x128xf32>
    tpu.vector_store %arg9[%c0_105, %c0_106], %277 {strides = array<i32>} : memref<8x128xf32, #tpu.memory_space<vmem>>, vector<8x128xf32>,
    %279 = arith.select %276, %269, %242 : vector<8x128xi1>, vector<8x128xf32>
    %c0_107 = arith.constant 0 : index
    %c0_108 = arith.constant 0 : index
    %280 = vector.load %arg10[%c0_107, %c0_108] : memref<8x128xf32, #tpu.memory_space<vmem>>, vector<8x128xf32>
    tpu.vector_store %arg10[%c0_107, %c0_108], %279 {strides = array<i32>} : memref<8x128xf32, #tpu.memory_space<vmem>>, vector<8x128xf32>,
    %cst_109 = arith.constant 0.000000e+00 : f32
    %281 = vector.broadcast %cst_109 : f32 to vector<8x128xf32>
    %282 = arith.select %276, %271, %281 : vector<8x128xi1>, vector<8x128xf32>
    %c5 = arith.constant 5 : index
    %c0_110 = arith.constant 0 : index
    %c0_111 = arith.constant 0 : index
    %283 = vector.load %arg6[%c5, %c0_110, %c0_111] : memref<8x8x128xf32, #tpu.memory_space<vmem>>, vector<1x8x128xf32>
    %284 = vector.shape_cast %283 : vector<1x8x128xf32> to vector<8x128xf32>
    %285 = vector.shape_cast %282 : vector<8x128xf32> to vector<1x8x128xf32>
    tpu.vector_store %arg6[%c5, %c0_110, %c0_111], %285 {strides = array<i32>} : memref<8x8x128xf32, #tpu.memory_space<vmem>>, vector<1x8x128xf32>,
    %c0_112 = arith.constant 0 : index
    %c0_113 = arith.constant 0 : index
    %286 = vector.load %arg9[%c0_112, %c0_113] : memref<8x128xf32, #tpu.memory_space<vmem>>, vector<8x128xf32>
    %c0_114 = arith.constant 0 : index
    %c0_115 = arith.constant 0 : index
    %287 = vector.load %arg10[%c0_114, %c0_115] : memref<8x128xf32, #tpu.memory_space<vmem>>, vector<8x128xf32>
    %c48 = arith.constant 48 : index
    %c0_116 = arith.constant 0 : index
    %288 = vector.load %arg11[%c48, %c0_116] : memref<64x512xf32, #tpu.memory_space<vmem>>, vector<8x512xf32>
    %289 = arith.truncf %286 : vector<8x128xf32> to vector<8x128xbf16>
    %cst_117 = arith.constant dense<0.000000e+00> : vector<8x512xf32>
    %290 = tpu.matmul %289, %13, %cst_117 {dimension_numbers = #tpu.dot_dimension_numbers<[1], [0], [0], [1], [0, 0, 1, 1], [], []>} : vector<8x128xbf16>, vector<128x512xbf16>, vector<8x512xf32> -> vector<8x512xf32>
    %291 = arith.addf %288, %290 : vector<8x512xf32>
    %292 = vector.extract_strided_slice %291 {offsets = [0, 0], sizes = [8, 128], strides = [1, 1]} : vector<8x512xf32> to vector<8x128xf32>
    %293 = arith.negf %292 : vector<8x128xf32>
    %294 = math.exp %293 : vector<8x128xf32>
    %cst_118 = arith.constant 1.000000e+00 : f32
    %295 = vector.broadcast %cst_118 : f32 to vector<8x128xf32>
    %296 = arith.addf %295, %294 : vector<8x128xf32>
    %297 = arith.divf %295, %296 : vector<8x128xf32>
    %298 = vector.extract_strided_slice %291 {offsets = [0, 128], sizes = [8, 128], strides = [1, 1]} : vector<8x512xf32> to vector<8x128xf32>
    %299 = arith.negf %298 : vector<8x128xf32>
    %300 = math.exp %299 : vector<8x128xf32>
    %cst_119 = arith.constant 1.000000e+00 : f32
    %301 = vector.broadcast %cst_119 : f32 to vector<8x128xf32>
    %302 = arith.addf %301, %300 : vector<8x128xf32>
    %303 = arith.divf %301, %302 : vector<8x128xf32>
    %304 = vector.extract_strided_slice %291 {offsets = [0, 256], sizes = [8, 128], strides = [1, 1]} : vector<8x512xf32> to vector<8x128xf32>
    %305 = math.tanh %304 : vector<8x128xf32>
    %306 = vector.extract_strided_slice %291 {offsets = [0, 384], sizes = [8, 128], strides = [1, 1]} : vector<8x512xf32> to vector<8x128xf32>
    %307 = arith.negf %306 : vector<8x128xf32>
    %308 = math.exp %307 : vector<8x128xf32>
    %cst_120 = arith.constant 1.000000e+00 : f32
    %309 = vector.broadcast %cst_120 : f32 to vector<8x128xf32>
    %310 = arith.addf %309, %308 : vector<8x128xf32>
    %311 = arith.divf %309, %310 : vector<8x128xf32>
    %312 = arith.mulf %303, %287 : vector<8x128xf32>
    %313 = arith.mulf %297, %305 : vector<8x128xf32>
    %314 = arith.addf %312, %313 : vector<8x128xf32>
    %315 = math.tanh %314 : vector<8x128xf32>
    %316 = arith.mulf %311, %315 : vector<8x128xf32>
    %c6_i32 = arith.constant 6 : i32
    %317 = arith.addi %15, %c6_i32 : i32
    %318 = vector.broadcast %317 : i32 to vector<8x1xi32>
    %319 = arith.cmpi slt, %318, %14 : vector<8x1xi32>
    %320 = vector.shape_cast %319 : vector<8x1xi1> to vector<8x1xi1>
    %321 = vector.broadcast %320 : vector<8x1xi1> to vector<8x128xi1>
    %322 = arith.select %321, %316, %286 : vector<8x128xi1>, vector<8x128xf32>
    %c0_121 = arith.constant 0 : index
    %c0_122 = arith.constant 0 : index
    %323 = vector.load %arg9[%c0_121, %c0_122] : memref<8x128xf32, #tpu.memory_space<vmem>>, vector<8x128xf32>
    tpu.vector_store %arg9[%c0_121, %c0_122], %322 {strides = array<i32>} : memref<8x128xf32, #tpu.memory_space<vmem>>, vector<8x128xf32>,
    %324 = arith.select %321, %314, %287 : vector<8x128xi1>, vector<8x128xf32>
    %c0_123 = arith.constant 0 : index
    %c0_124 = arith.constant 0 : index
    %325 = vector.load %arg10[%c0_123, %c0_124] : memref<8x128xf32, #tpu.memory_space<vmem>>, vector<8x128xf32>
    tpu.vector_store %arg10[%c0_123, %c0_124], %324 {strides = array<i32>} : memref<8x128xf32, #tpu.memory_space<vmem>>, vector<8x128xf32>,
    %cst_125 = arith.constant 0.000000e+00 : f32
    %326 = vector.broadcast %cst_125 : f32 to vector<8x128xf32>
    %327 = arith.select %321, %316, %326 : vector<8x128xi1>, vector<8x128xf32>
    %c6 = arith.constant 6 : index
    %c0_126 = arith.constant 0 : index
    %c0_127 = arith.constant 0 : index
    %328 = vector.load %arg6[%c6, %c0_126, %c0_127] : memref<8x8x128xf32, #tpu.memory_space<vmem>>, vector<1x8x128xf32>
    %329 = vector.shape_cast %328 : vector<1x8x128xf32> to vector<8x128xf32>
    %330 = vector.shape_cast %327 : vector<8x128xf32> to vector<1x8x128xf32>
    tpu.vector_store %arg6[%c6, %c0_126, %c0_127], %330 {strides = array<i32>} : memref<8x8x128xf32, #tpu.memory_space<vmem>>, vector<1x8x128xf32>,
    %c0_128 = arith.constant 0 : index
    %c0_129 = arith.constant 0 : index
    %331 = vector.load %arg9[%c0_128, %c0_129] : memref<8x128xf32, #tpu.memory_space<vmem>>, vector<8x128xf32>
    %c0_130 = arith.constant 0 : index
    %c0_131 = arith.constant 0 : index
    %332 = vector.load %arg10[%c0_130, %c0_131] : memref<8x128xf32, #tpu.memory_space<vmem>>, vector<8x128xf32>
    %c56 = arith.constant 56 : index
    %c0_132 = arith.constant 0 : index
    %333 = vector.load %arg11[%c56, %c0_132] : memref<64x512xf32, #tpu.memory_space<vmem>>, vector<8x512xf32>
    %334 = arith.truncf %331 : vector<8x128xf32> to vector<8x128xbf16>
    %cst_133 = arith.constant dense<0.000000e+00> : vector<8x512xf32>
    %335 = tpu.matmul %334, %13, %cst_133 {dimension_numbers = #tpu.dot_dimension_numbers<[1], [0], [0], [1], [0, 0, 1, 1], [], []>} : vector<8x128xbf16>, vector<128x512xbf16>, vector<8x512xf32> -> vector<8x512xf32>
    %336 = arith.addf %333, %335 : vector<8x512xf32>
    %337 = vector.extract_strided_slice %336 {offsets = [0, 0], sizes = [8, 128], strides = [1, 1]} : vector<8x512xf32> to vector<8x128xf32>
    %338 = arith.negf %337 : vector<8x128xf32>
    %339 = math.exp %338 : vector<8x128xf32>
    %cst_134 = arith.constant 1.000000e+00 : f32
    %340 = vector.broadcast %cst_134 : f32 to vector<8x128xf32>
    %341 = arith.addf %340, %339 : vector<8x128xf32>
    %342 = arith.divf %340, %341 : vector<8x128xf32>
    %343 = vector.extract_strided_slice %336 {offsets = [0, 128], sizes = [8, 128], strides = [1, 1]} : vector<8x512xf32> to vector<8x128xf32>
    %344 = arith.negf %343 : vector<8x128xf32>
    %345 = math.exp %344 : vector<8x128xf32>
    %cst_135 = arith.constant 1.000000e+00 : f32
    %346 = vector.broadcast %cst_135 : f32 to vector<8x128xf32>
    %347 = arith.addf %346, %345 : vector<8x128xf32>
    %348 = arith.divf %346, %347 : vector<8x128xf32>
    %349 = vector.extract_strided_slice %336 {offsets = [0, 256], sizes = [8, 128], strides = [1, 1]} : vector<8x512xf32> to vector<8x128xf32>
    %350 = math.tanh %349 : vector<8x128xf32>
    %351 = vector.extract_strided_slice %336 {offsets = [0, 384], sizes = [8, 128], strides = [1, 1]} : vector<8x512xf32> to vector<8x128xf32>
    %352 = arith.negf %351 : vector<8x128xf32>
    %353 = math.exp %352 : vector<8x128xf32>
    %cst_136 = arith.constant 1.000000e+00 : f32
    %354 = vector.broadcast %cst_136 : f32 to vector<8x128xf32>
    %355 = arith.addf %354, %353 : vector<8x128xf32>
    %356 = arith.divf %354, %355 : vector<8x128xf32>
    %357 = arith.mulf %348, %332 : vector<8x128xf32>
    %358 = arith.mulf %342, %350 : vector<8x128xf32>
    %359 = arith.addf %357, %358 : vector<8x128xf32>
    %360 = math.tanh %359 : vector<8x128xf32>
    %361 = arith.mulf %356, %360 : vector<8x128xf32>
    %c7_i32 = arith.constant 7 : i32
    %362 = arith.addi %15, %c7_i32 : i32
    %363 = vector.broadcast %362 : i32 to vector<8x1xi32>
    %364 = arith.cmpi slt, %363, %14 : vector<8x1xi32>
    %365 = vector.shape_cast %364 : vector<8x1xi1> to vector<8x1xi1>
    %366 = vector.broadcast %365 : vector<8x1xi1> to vector<8x128xi1>
    %367 = arith.select %366, %361, %331 : vector<8x128xi1>, vector<8x128xf32>
    %c0_137 = arith.constant 0 : index
    %c0_138 = arith.constant 0 : index
    %368 = vector.load %arg9[%c0_137, %c0_138] : memref<8x128xf32, #tpu.memory_space<vmem>>, vector<8x128xf32>
    tpu.vector_store %arg9[%c0_137, %c0_138], %367 {strides = array<i32>} : memref<8x128xf32, #tpu.memory_space<vmem>>, vector<8x128xf32>,
    %369 = arith.select %366, %359, %332 : vector<8x128xi1>, vector<8x128xf32>
    %c0_139 = arith.constant 0 : index
    %c0_140 = arith.constant 0 : index
    %370 = vector.load %arg10[%c0_139, %c0_140] : memref<8x128xf32, #tpu.memory_space<vmem>>, vector<8x128xf32>
    tpu.vector_store %arg10[%c0_139, %c0_140], %369 {strides = array<i32>} : memref<8x128xf32, #tpu.memory_space<vmem>>, vector<8x128xf32>,
    %cst_141 = arith.constant 0.000000e+00 : f32
    %371 = vector.broadcast %cst_141 : f32 to vector<8x128xf32>
    %372 = arith.select %366, %361, %371 : vector<8x128xi1>, vector<8x128xf32>
    %c7 = arith.constant 7 : index
    %c0_142 = arith.constant 0 : index
    %c0_143 = arith.constant 0 : index
    %373 = vector.load %arg6[%c7, %c0_142, %c0_143] : memref<8x8x128xf32, #tpu.memory_space<vmem>>, vector<1x8x128xf32>
    %374 = vector.shape_cast %373 : vector<1x8x128xf32> to vector<8x128xf32>
    %375 = vector.shape_cast %372 : vector<8x128xf32> to vector<1x8x128xf32>
    tpu.vector_store %arg6[%c7, %c0_142, %c0_143], %375 {strides = array<i32>} : memref<8x8x128xf32, #tpu.memory_space<vmem>>, vector<1x8x128xf32>,
    %c0_i32_144 = arith.constant 0 : i32
    %376 = arith.cmpi eq, %arg0, %c0_i32_144 : i32
    %377 = arith.extui %376 : i1 to i32
    %c0_i32_145 = arith.constant 0 : i32
    %378 = arith.cmpi ne, %377, %c0_i32_145 : i32
    scf.if %378 {
      %c0_146 = arith.constant 0 : index
      %c0_147 = arith.constant 0 : index
      %379 = vector.load %arg9[%c0_146, %c0_147] : memref<8x128xf32, #tpu.memory_space<vmem>>, vector<8x128xf32>
      %c0_148 = arith.constant 0 : index
      %c0_149 = arith.constant 0 : index
      %380 = vector.load %arg7[%c0_148, %c0_149] : memref<8x128xf32, #tpu.memory_space<vmem>>, vector<8x128xf32>
      tpu.vector_store %arg7[%c0_148, %c0_149], %379 {strides = array<i32>} : memref<8x128xf32, #tpu.memory_space<vmem>>, vector<8x128xf32>,
      %c0_150 = arith.constant 0 : index
      %c0_151 = arith.constant 0 : index
      %381 = vector.load %arg10[%c0_150, %c0_151] : memref<8x128xf32, #tpu.memory_space<vmem>>, vector<8x128xf32>
      %c0_152 = arith.constant 0 : index
      %c0_153 = arith.constant 0 : index
      %382 = vector.load %arg8[%c0_152, %c0_153] : memref<8x128xf32, #tpu.memory_space<vmem>>, vector<8x128xf32>
      tpu.vector_store %arg8[%c0_152, %c0_153], %381 {strides = array<i32>} : memref<8x128xf32, #tpu.memory_space<vmem>>, vector<8x128xf32>,
    } else {
    }
    return
  }
  func.func @transform_0(%arg0: i32) -> (i32, i32) {
    %c0_i32 = arith.constant 0 : i32
    %c0_i32_0 = arith.constant 0 : i32
    %c0_i32_1 = arith.constant 0 : i32
    return %c0_i32, %c0_i32_0 : i32, i32
  }
  func.func @transform_1(%arg0: i32) -> (i32, i32, i32) {
    %c0_i32 = arith.constant 0 : i32
    %c0_i32_0 = arith.constant 0 : i32
    %c0_i32_1 = arith.constant 0 : i32
    return %arg0, %c0_i32, %c0_i32_0 : i32, i32, i32
  }
  func.func @transform_2(%arg0: i32) -> (i32, i32) {
    %c0_i32 = arith.constant 0 : i32
    %c0_i32_0 = arith.constant 0 : i32
    %c0_i32_1 = arith.constant 0 : i32
    return %c0_i32, %c0_i32_0 : i32, i32
  }
  func.func @transform_3(%arg0: i32) -> (i32, i32) {
    %c0_i32 = arith.constant 0 : i32
    %c0_i32_0 = arith.constant 0 : i32
    %c0_i32_1 = arith.constant 0 : i32
    return %c0_i32, %c0_i32_0 : i32, i32
  }
  func.func @transform_4(%arg0: i32) -> (i32, i32) {
    %c0_i32 = arith.constant 0 : i32
    %c0_i32_0 = arith.constant 0 : i32
    %c0_i32_1 = arith.constant 0 : i32
    return %c0_i32, %c0_i32_0 : i32, i32
  }
  func.func @transform_5(%arg0: i32) -> (i32, i32, i32) {
    %c0_i32 = arith.constant 0 : i32
    %c0_i32_0 = arith.constant 0 : i32
    %c0_i32_1 = arith.constant 0 : i32
    return %arg0, %c0_i32, %c0_i32_0 : i32, i32, i32
  }
  func.func @transform_6(%arg0: i32) -> (i32, i32) {
    %c0_i32 = arith.constant 0 : i32
    %c0_i32_0 = arith.constant 0 : i32
    %c0_i32_1 = arith.constant 0 : i32
    return %c0_i32, %c0_i32_0 : i32, i32
  }
  func.func @transform_7(%arg0: i32) -> (i32, i32) {
    %c0_i32 = arith.constant 0 : i32
    %c0_i32_0 = arith.constant 0 : i32
    %c0_i32_1 = arith.constant 0 : i32
    return %c0_i32, %c0_i32_0 : i32, i32
  }
}

</mosaic_0001>

<llo_original>
// kernel: tpu_custom_call.1
$region0: #{tpu_custom_call.1}
  #allocation0 [shape = 'u32[]', space=smem, size = 0x4, offset = 0x4, fixed_abs, tag = 'smem constant byte address 0x4 - core index']
  #allocation1 [shape = 'u32[144,128]{1,0:T(1,128)}', space=vmem, size = 0x12000, scoped, tag = 'internal scratch']
  #allocation2 [shape = 'f32[8,128]{1,0:T(8,128)}', space=vmem, size = 0x1000, scoped, tag = 'scratch operand']
  #allocation3 [shape = 'f32[8,128]{1,0:T(8,128)}', space=vmem, size = 0x1000, scoped, tag = 'scratch operand']
  #allocation4 [shape = 'f32[64,512]{1,0:T(8,128)}', space=vmem, size = 0x20000, scoped, tag = 'scratch operand']
  %s0 = inlined_call_operand.vmem [shape: s32[8,1], index: 0, kind: input, shape index: {}]
  %s1 = inlined_call_operand.hbm [shape: f32[8,8,32], index: 1, kind: input, shape index: {}]
  %s2 = inlined_call_operand.hbm [shape: f32[32,512], index: 2, kind: input, shape index: {}]
  %s3 = inlined_call_operand.vmem [shape: f32[1,512], index: 3, kind: input, shape index: {}]
  %s4 = inlined_call_operand.hbm [shape: bf16[128,512], index: 4, kind: input, shape index: {}]
  %s5 = inlined_call_operand.hbm [shape: f32[8,8,128], index: 5, kind: output, shape index: {0}]
  %s6 = inlined_call_operand.hbm [shape: f32[8,128], index: 6, kind: output, shape index: {1}]
  %s7 = inlined_call_operand.hbm [shape: f32[8,128], index: 7, kind: output, shape index: {2}]
  %8 = xla_tuple %s5, %s6, %s7
  %s9 = sld [smem:[#allocation0]]
  $region66: #{tpu_custom_call.1} parent=0
    _
  %s11 = ssub.s32 1, %s9
  %s12 = scalar_select 0, %s11, %s9
  $region1: #{tpu_custom_call.1} parent=0
    #allocation5 [shape = 'u8[32768]{0}', space=vmem, size = 0x8000, scoped, tag = 'input window, operand 1, single buffered']
    #allocation6 [shape = 's32[1]{0}', space=sflag, size = 0x4, scoped, tag = 'scoped memory for tpu_custom_call.1']
    #allocation7 [shape = 's32[1]{0}', space=sflag, size = 0x4, scoped, tag = 'scoped memory for tpu_custom_call.1']
    #allocation8 [shape = 'u8[65536]{0}', space=vmem, size = 0x10000, scoped, tag = 'input window, operand 2, single buffered']
    #allocation9 [shape = 's32[1]{0}', space=sflag, size = 0x4, scoped, tag = 'scoped memory for tpu_custom_call.1']
    #allocation10 [shape = 'u8[131072]{0}', space=vmem, size = 0x20000, scoped, tag = 'input window, operand 4, single buffered']
    #allocation11 [shape = 'u8[32768]{0}', space=vmem, size = 0x8000, scoped, tag = 'output window, operand 0, single buffered']
    #allocation12 [shape = 'u8[4096]{0}', space=vmem, size = 0x1000, scoped, tag = 'output window, operand 1, single buffered']
    #allocation13 [shape = 's32[1]{0}', space=sflag, size = 0x4, scoped, tag = 'scoped memory for tpu_custom_call.1']
    #allocation14 [shape = 'u8[4096]{0}', space=vmem, size = 0x1000, scoped, tag = 'output window, operand 2, single buffered']
    %13 = vsyncpa [#allocation6], 0
    %14 = vsyncpa [#allocation9], 0
    %15 = vsyncpa [#allocation7], 0
    %16 = vsyncpa [#allocation13], 0
    // Predicated region
    $region2: #{tpu_custom_call.1} parent=1 // pred_check
      _
    $region3: #{tpu_custom_call.1} parent=1 // pred_check_branch
      %18 = sbr.rel (0) target = $region5
    $region4: #{tpu_custom_call.1} parent=1 // pred_region
      _
    $region5: #{tpu_custom_call.1} parent=1 // pred_fallthru
      _
    // Predicated region
    $region6: #{tpu_custom_call.1} parent=1 // pred_check
      _
    $region7: #{tpu_custom_call.1} parent=1 // pred_check_branch
      %20 = sbr.rel (0) target = $region9
    $region8: #{tpu_custom_call.1} parent=1 // pred_region
      %s22 = ssub.s32 1024, 1024
      %23 = vsyncadd [#allocation6], %s22
      %s24 = sshll.u32 [#allocation5], 4
      %s25 = int_to_ptr.vmem [resolvable:$true] %s24
      %30 = dma.hbm_to_vmem [thread:$0]  %s1, 1024, %s25, [#allocation6], 128, 128, 8
    $region9: #{tpu_custom_call.1} parent=1 // pred_fallthru
      _
    // Predicated region
    $region10: #{tpu_custom_call.1} parent=1 // pred_check
      _
    $region11: #{tpu_custom_call.1} parent=1 // pred_check_branch
      %32 = sbr.rel (0) target = $region13
    $region12: #{tpu_custom_call.1} parent=1 // pred_region
      %s34 = ssub.s32 2048, 2048
      %35 = vsyncadd [#allocation9], %s34
      %s36 = sshll.u32 [#allocation8], 4
      %s37 = int_to_ptr.vmem [resolvable:$true] %s36
      %42 = dma.hbm_to_vmem [thread:$0]  %s2, 2048, %s37, [#allocation9], 512, 512, 32
    $region13: #{tpu_custom_call.1} parent=1 // pred_fallthru
      _
    // Predicated region
    $region14: #{tpu_custom_call.1} parent=1 // pred_check
      _
    $region15: #{tpu_custom_call.1} parent=1 // pred_check_branch
      %44 = sbr.rel (0) target = $region17
    $region16: #{tpu_custom_call.1} parent=1 // pred_region
      _
    $region17: #{tpu_custom_call.1} parent=1 // pred_fallthru
      _
    // Predicated region
    $region18: #{tpu_custom_call.1} parent=1 // pred_check
      _
    $region19: #{tpu_custom_call.1} parent=1 // pred_check_branch
      %46 = sbr.rel (0) target = $region21
    $region20: #{tpu_custom_call.1} parent=1 // pred_region
      %s48 = ssub.s32 4096, 4096
      %49 = vsyncadd [#allocation9], %s48
      %s50 = sshll.u32 [#allocation10], 4
      %s51 = int_to_ptr.vmem [resolvable:$true] %s50
      %56 = dma.hbm_to_vmem [thread:$0]  %s4, 4096, %s51, [#allocation9], 256, 256, 16
    $region21: #{tpu_custom_call.1} parent=1 // pred_fallthru
      _
    // Predicated region
    $region22: #{tpu_custom_call.1} parent=1 // pred_check
      _
    $region23: #{tpu_custom_call.1} parent=1 // pred_check_branch
      %58 = sbr.rel (0) target = $region25
    $region24: #{tpu_custom_call.1} parent=1 // pred_region
      %59 = dma.done [#allocation6], 1024
    $region25: #{tpu_custom_call.1} parent=1 // pred_fallthru
      _
    // Predicated region
    $region26: #{tpu_custom_call.1} parent=1 // pred_check
      _
    $region27: #{tpu_custom_call.1} parent=1 // pred_check_branch
      %61 = sbr.rel (0) target = $region29
    $region28: #{tpu_custom_call.1} parent=1 // pred_region
      %62 = dma.done [#allocation9], 2048
    $region29: #{tpu_custom_call.1} parent=1 // pred_fallthru
      _
    // Predicated region
    $region30: #{tpu_custom_call.1} parent=1 // pred_check
      _
    $region31: #{tpu_custom_call.1} parent=1 // pred_check_branch
      %64 = sbr.rel (0) target = $region33
    $region32: #{tpu_custom_call.1} parent=1 // pred_region
      %65 = dma.done [#allocation9], 4096
    $region33: #{tpu_custom_call.1} parent=1 // pred_fallthru
      _
    %p67 = scmp.eq.s32.totalorder 0, 0
    // Predicated region
    $region34: #{tpu_custom_call.1} parent=1 // pred_check
      %p68 = pneg %p67
    $region35: #{tpu_custom_call.1} parent=1 // pred_check_branch
      %70 = sbr.rel (%p68) target = $region37
    $region36: #{tpu_custom_call.1} parent=1 // pred_region
      %71 = vst [vmem:[#allocation2] sm:$0xff] 0.0
      %72 = vst [vmem:[#allocation3] sm:$0xff] 0.0
    $region37: #{tpu_custom_call.1} parent=1 // pred_fallthru
      _
    %v73 = vld [vmem:[#allocation5] sm:$0xff]
    %v74 = vld [vmem:[#allocation5 + $0x8] sm:$0xff]
    %v75 = vld [vmem:[#allocation5 + $0x10] sm:$0xff]
    %v76 = vld [vmem:[#allocation5 + $0x18] sm:$0xff]
    %v77 = vld [vmem:[#allocation5 + $0x20] sm:$0xff]
    %v78 = vld [vmem:[#allocation5 + $0x28] sm:$0xff]
    %v79 = vld [vmem:[#allocation5 + $0x30] sm:$0xff]
    %v80 = vld [vmem:[#allocation5 + $0x38] sm:$0xff]
    %v81 = vpack.c.bf16 %v74, %v73
    %v82 = vpack.c.bf16 %v76, %v75
    %v83 = vpack.c.bf16 %v78, %v77
    %v84 = vpack.c.bf16 %v80, %v79
    %v85 = vld [vmem:[#allocation8] sm:$0xff]
    %v86 = vld [vmem:[#allocation8 + $0x8] sm:$0xff]
    %v87 = vld [vmem:[#allocation8 + $0x10] sm:$0xff]
    %v88 = vld [vmem:[#allocation8 + $0x18] sm:$0xff]
    %v89 = vld [vmem:[#allocation8 + $0x20] sm:$0xff]
    %v90 = vld [vmem:[#allocation8 + $0x28] sm:$0xff]
    %v91 = vld [vmem:[#allocation8 + $0x30] sm:$0xff]
    %v92 = vld [vmem:[#allocation8 + $0x38] sm:$0xff]
    %v93 = vld [vmem:[#allocation8 + $0x40] sm:$0xff]
    %v94 = vld [vmem:[#allocation8 + $0x48] sm:$0xff]
    %v95 = vld [vmem:[#allocation8 + $0x50] sm:$0xff]
    %v96 = vld [vmem:[#allocation8 + $0x58] sm:$0xff]
    %v97 = vld [vmem:[#allocation8 + $0x60] sm:$0xff]
    %v98 = vld [vmem:[#allocation8 + $0x68] sm:$0xff]
    %v99 = vld [vmem:[#allocation8 + $0x70] sm:$0xff]
    %v100 = vld [vmem:[#allocation8 + $0x78] sm:$0xff]
    %v101 = vpack.c.bf16 %v89, %v85
    %v102 = vpack.c.bf16 %v90, %v86
    %v103 = vpack.c.bf16 %v91, %v87
    %v104 = vpack.c.bf16 %v92, %v88
    %v105 = vpack.c.bf16 %v97, %v93
    %v106 = vpack.c.bf16 %v98, %v94
    %v107 = vpack.c.bf16 %v99, %v95
    %v108 = vpack.c.bf16 %v100, %v96
    %v109 = vld [vmem:[%s3] sm:$0xf]
    %v111 = vlaneseq
    %v112 = vshrl.u32 %v111, 7
    %v113 = vsub.s32 0, %v112
    %v114 = vrot.slane %v109, %v113
    %v115 = vlaneseq
    %v116 = vshrl.u32 %v115, 7
    %v117 = vsub.s32 1, %v116
    %v118 = vrot.slane %v109, %v117
    %v119 = vlaneseq
    %v120 = vshrl.u32 %v119, 7
    %v121 = vsub.s32 2, %v120
    %v122 = vrot.slane %v109, %v121
    %v123 = vlaneseq
    %v124 = vshrl.u32 %v123, 7
    %v125 = vsub.s32 3, %v124
    %v126 = vrot.slane %v109, %v125
    %vm131 = vcmask 261120
    %v133 = vsel %vm131, %v81, 0
    %v136 = vsel %vm131, %v82, 0
    %v139 = vsel %vm131, %v83, 0
    %v142 = vsel %vm131, %v84, 0
    %144 = vmatprep.subr.bf16.mxu0 %v102
    %145 = vmatpush1.bf16.msra.mxu0 %v101
    %146 = vmatprep.subr.bf16.mxu0 %v106
    %147 = vmatpush1.bf16.msra.mxu0 %v105
    %148 = vmatprep.subr.bf16.mxu0 0
    %149 = vmatpush1.bf16.msra.mxu0 0
    %150 = vmatprep.subr.bf16.mxu0 0
    %151 = vmatpush1.bf16.msra.mxu0 0
    %152 = vmatprep.subr.bf16.mxu0 0
    %153 = vmatpush1.bf16.msra.mxu0 0
    %154 = vmatprep.subr.bf16.mxu0 0
    %155 = vmatpush1.bf16.msra.mxu0 0
    %156 = vmatprep.subr.bf16.mxu0 0
    %157 = vmatpush1.bf16.msra.mxu0 0
    %158 = vmatprep.subr.bf16.mxu0 0
    %159 = vmatpush1.bf16.msra.mxu0 0
    %160 = vmatprep.subr.bf16.mxu0 0
    %161 = vmatpush1.bf16.msra.mxu0 0
    %162 = vmatprep.subr.bf16.mxu0 0
    %163 = vmatpush1.bf16.msra.mxu0 0
    %164 = vmatprep.subr.bf16.mxu0 0
    %165 = vmatpush1.bf16.msra.mxu0 0
    %166 = vmatprep.subr.bf16.mxu0 0
    %167 = vmatpush1.bf16.msra.mxu0 0
    %168 = vmatprep.subr.bf16.mxu0 0
    %169 = vmatpush1.bf16.msra.mxu0 0
    %170 = vmatprep.subr.bf16.mxu0 0
    %171 = vmatpush1.bf16.msra.mxu0 0
    %172 = vmatprep.subr.bf16.mxu0 0
    %173 = vmatpush1.bf16.msra.mxu0 0
    %174 = vmatprep.subr.bf16.mxu0 0
    %175 = vmatpush1.bf16.msra.mxu0 0
    %176 = vmatprep.mubr.bf16.mxu0 0
    %177 = vmatmul.mubr.bf16.gmra.mrb[0].mxu0 %v133
    %v178 = vpop.f32.mrb[0].mxu0
    %v179 = vadd.f32 %v114, %v178
    %v180 = vpop.f32.mrb[0].mxu0
    %v181 = vadd.f32 %v118, %v180
    %v182 = vpop.f32.mrb[0].mxu0
    %v183 = vadd.f32 %v114, %v182
    %v184 = vpop.f32.mrb[0].mxu0
    %v185 = vadd.f32 %v118, %v184
    %186 = vmatprep.mubr.bf16.mxu0 0
    %187 = vmatmul.mubr.bf16.gmra.mrb[0].mxu0 %v136
    %v188 = vpop.f32.mrb[0].mxu0
    %v189 = vadd.f32 %v114, %v188
    %v190 = vpop.f32.mrb[0].mxu0
    %v191 = vadd.f32 %v118, %v190
    %v192 = vpop.f32.mrb[0].mxu0
    %v193 = vadd.f32 %v114, %v192
    %v194 = vpop.f32.mrb[0].mxu0
    %v195 = vadd.f32 %v118, %v194
    %196 = vmatprep.mubr.bf16.mxu0 0
    %197 = vmatmul.mubr.bf16.gmra.mrb[0].mxu0 %v139
    %v198 = vpop.f32.mrb[0].mxu0
    %v199 = vadd.f32 %v114, %v198
    %v200 = vpop.f32.mrb[0].mxu0
    %v201 = vadd.f32 %v118, %v200
    %v202 = vpop.f32.mrb[0].mxu0
    %v203 = vadd.f32 %v114, %v202
    %v204 = vpop.f32.mrb[0].mxu0
    %v205 = vadd.f32 %v118, %v204
    %206 = vmatprep.mubr.bf16.mxu0 0
    %207 = vmatmul.mubr.bf16.gmra.mrb[0].mxu0 %v142
    %v208 = vpop.f32.mrb[0].mxu0
    %v209 = vadd.f32 %v114, %v208
    %v210 = vpop.f32.mrb[0].mxu0
    %v211 = vadd.f32 %v118, %v210
    %v212 = vpop.f32.mrb[0].mxu0
    %v213 = vadd.f32 %v114, %v212
    %v214 = vpop.f32.mrb[0].mxu0
    %v215 = vadd.f32 %v118, %v214
    %216 = vdwg.mxu0
    %217 = vmatprep.subr.bf16.mxu0 %v104
    %218 = vmatpush1.bf16.msra.mxu0 %v103
    %219 = vmatprep.subr.bf16.mxu0 %v108
    %220 = vmatpush1.bf16.msra.mxu0 %v107
    %221 = vmatprep.subr.bf16.mxu0 0
    %222 = vmatpush1.bf16.msra.mxu0 0
    %223 = vmatprep.subr.bf16.mxu0 0
    %224 = vmatpush1.bf16.msra.mxu0 0
    %225 = vmatprep.subr.bf16.mxu0 0
    %226 = vmatpush1.bf16.msra.mxu0 0
    %227 = vmatprep.subr.bf16.mxu0 0
    %228 = vmatpush1.bf16.msra.mxu0 0
    %229 = vmatprep.subr.bf16.mxu0 0
    %230 = vmatpush1.bf16.msra.mxu0 0
    %231 = vmatprep.subr.bf16.mxu0 0
    %232 = vmatpush1.bf16.msra.mxu0 0
    %233 = vmatprep.subr.bf16.mxu0 0
    %234 = vmatpush1.bf16.msra.mxu0 0
    %235 = vmatprep.subr.bf16.mxu0 0
    %236 = vmatpush1.bf16.msra.mxu0 0
    %237 = vmatprep.subr.bf16.mxu0 0
    %238 = vmatpush1.bf16.msra.mxu0 0
    %239 = vmatprep.subr.bf16.mxu0 0
    %240 = vmatpush1.bf16.msra.mxu0 0
    %241 = vmatprep.subr.bf16.mxu0 0
    %242 = vmatpush1.bf16.msra.mxu0 0
    %243 = vmatprep.subr.bf16.mxu0 0
    %244 = vmatpush1.bf16.msra.mxu0 0
    %245 = vmatprep.subr.bf16.mxu0 0
    %246 = vmatpush1.bf16.msra.mxu0 0
    %247 = vmatprep.subr.bf16.mxu0 0
    %248 = vmatpush1.bf16.msra.mxu0 0
    %249 = vmatprep.mubr.bf16.mxu0 0
    %250 = vmatmul.mubr.bf16.gmra.mrb[0].mxu0 %v133
    %v251 = vpop.f32.mrb[0].mxu0
    %v252 = vadd.f32 %v122, %v251
    %v253 = vpop.f32.mrb[0].mxu0
    %v254 = vadd.f32 %v126, %v253
    %v255 = vpop.f32.mrb[0].mxu0
    %v256 = vadd.f32 %v122, %v255
    %v257 = vpop.f32.mrb[0].mxu0
    %v258 = vadd.f32 %v126, %v257
    %259 = vmatprep.mubr.bf16.mxu0 0
    %260 = vmatmul.mubr.bf16.gmra.mrb[0].mxu0 %v136
    %v261 = vpop.f32.mrb[0].mxu0
    %v262 = vadd.f32 %v122, %v261
    %v263 = vpop.f32.mrb[0].mxu0
    %v264 = vadd.f32 %v126, %v263
    %v265 = vpop.f32.mrb[0].mxu0
    %v266 = vadd.f32 %v122, %v265
    %v267 = vpop.f32.mrb[0].mxu0
    %v268 = vadd.f32 %v126, %v267
    %269 = vmatprep.mubr.bf16.mxu0 0
    %270 = vmatmul.mubr.bf16.gmra.mrb[0].mxu0 %v139
    %v271 = vpop.f32.mrb[0].mxu0
    %v272 = vadd.f32 %v122, %v271
    %v273 = vpop.f32.mrb[0].mxu0
    %v274 = vadd.f32 %v126, %v273
    %v275 = vpop.f32.mrb[0].mxu0
    %v276 = vadd.f32 %v122, %v275
    %v277 = vpop.f32.mrb[0].mxu0
    %v278 = vadd.f32 %v126, %v277
    %279 = vmatprep.mubr.bf16.mxu0 0
    %280 = vmatmul.mubr.bf16.gmra.mrb[0].mxu0 %v142
    %v281 = vpop.f32.mrb[0].mxu0
    %v282 = vadd.f32 %v122, %v281
    %v283 = vpop.f32.mrb[0].mxu0
    %v284 = vadd.f32 %v126, %v283
    %v285 = vpop.f32.mrb[0].mxu0
    %v286 = vadd.f32 %v122, %v285
    %v287 = vpop.f32.mrb[0].mxu0
    %v288 = vadd.f32 %v126, %v287
    %289 = vdwg.mxu0
    %290 = vst [vmem:[#allocation4] sm:$0xff] %v179
    %291 = vst [vmem:[#allocation4 + $0x8] sm:$0xff] %v181
    %292 = vst [vmem:[#allocation4 + $0x10] sm:$0xff] %v252
    %293 = vst [vmem:[#allocation4 + $0x18] sm:$0xff] %v254
    %294 = vst [vmem:[#allocation4 + $0x20] sm:$0xff] %v183
    %295 = vst [vmem:[#allocation4 + $0x28] sm:$0xff] %v185
    %296 = vst [vmem:[#allocation4 + $0x30] sm:$0xff] %v256
    %297 = vst [vmem:[#allocation4 + $0x38] sm:$0xff] %v258
    %298 = vst [vmem:[#allocation4 + $0x40] sm:$0xff] %v189
    %299 = vst [vmem:[#allocation4 + $0x48] sm:$0xff] %v191
    %300 = vst [vmem:[#allocation4 + $0x50] sm:$0xff] %v262
    %301 = vst [vmem:[#allocation4 + $0x58] sm:$0xff] %v264
    %302 = vst [vmem:[#allocation4 + $0x60] sm:$0xff] %v193
    %303 = vst [vmem:[#allocation4 + $0x68] sm:$0xff] %v195
    %304 = vst [vmem:[#allocation4 + $0x70] sm:$0xff] %v266
    %305 = vst [vmem:[#allocation4 + $0x78] sm:$0xff] %v268
    %306 = vst [vmem:[#allocation4 + $0x80] sm:$0xff] %v199
    %307 = vst [vmem:[#allocation4 + $0x88] sm:$0xff] %v201
    %308 = vst [vmem:[#allocation4 + $0x90] sm:$0xff] %v272
    %309 = vst [vmem:[#allocation4 + $0x98] sm:$0xff] %v274
    %310 = vst [vmem:[#allocation4 + $0xa0] sm:$0xff] %v203
    %311 = vst [vmem:[#allocation4 + $0xa8] sm:$0xff] %v205
    %312 = vst [vmem:[#allocation4 + $0xb0] sm:$0xff] %v276
    %313 = vst [vmem:[#allocation4 + $0xb8] sm:$0xff] %v278
    %314 = vst [vmem:[#allocation4 + $0xc0] sm:$0xff] %v209
    %315 = vst [vmem:[#allocation4 + $0xc8] sm:$0xff] %v211
    %316 = vst [vmem:[#allocation4 + $0xd0] sm:$0xff] %v282
    %317 = vst [vmem:[#allocation4 + $0xd8] sm:$0xff] %v284
    %318 = vst [vmem:[#allocation4 + $0xe0] sm:$0xff] %v213
    %319 = vst [vmem:[#allocation4 + $0xe8] sm:$0xff] %v215
    %320 = vst [vmem:[#allocation4 + $0xf0] sm:$0xff] %v286
    %321 = vst [vmem:[#allocation4 + $0xf8] sm:$0xff] %v288
    %v322 = vld [vmem:[#allocation10] sm:$0xff]
    %v323 = vld [vmem:[#allocation10 + $0x8] sm:$0xff]
    %v324 = vld [vmem:[#allocation10 + $0x10] sm:$0xff]
    %v325 = vld [vmem:[#allocation10 + $0x18] sm:$0xff]
    %v326 = vld [vmem:[#allocation10 + $0x20] sm:$0xff]
    %v327 = vld [vmem:[#allocation10 + $0x28] sm:$0xff]
    %v328 = vld [vmem:[#allocation10 + $0x30] sm:$0xff]
    %v329 = vld [vmem:[#allocation10 + $0x38] sm:$0xff]
    %v330 = vld [vmem:[#allocation10 + $0x40] sm:$0xff]
    %v331 = vld [vmem:[#allocation10 + $0x48] sm:$0xff]
    %v332 = vld [vmem:[#allocation10 + $0x50] sm:$0xff]
    %v333 = vld [vmem:[#allocation10 + $0x58] sm:$0xff]
    %v334 = vld [vmem:[#allocation10 + $0x60] sm:$0xff]
    %v335 = vld [vmem:[#allocation10 + $0x68] sm:$0xff]
    %v336 = vld [vmem:[#allocation10 + $0x70] sm:$0xff]
    %v337 = vld [vmem:[#allocation10 + $0x78] sm:$0xff]
    %v338 = vld [vmem:[#allocation10 + $0x80] sm:$0xff]
    %v339 = vld [vmem:[#allocation10 + $0x88] sm:$0xff]
    %v340 = vld [vmem:[#allocation10 + $0x90] sm:$0xff]
    %v341 = vld [vmem:[#allocation10 + $0x98] sm:$0xff]
    %v342 = vld [vmem:[#allocation10 + $0xa0] sm:$0xff]
    %v343 = vld [vmem:[#allocation10 + $0xa8] sm:$0xff]
    %v344 = vld [vmem:[#allocation10 + $0xb0] sm:$0xff]
    %v345 = vld [vmem:[#allocation10 + $0xb8] sm:$0xff]
    %v346 = vld [vmem:[#allocation10 + $0xc0] sm:$0xff]
    %v347 = vld [vmem:[#allocation10 + $0xc8] sm:$0xff]
    %v348 = vld [vmem:[#allocation10 + $0xd0] sm:$0xff]
    %v349 = vld [vmem:[#allocation10 + $0xd8] sm:$0xff]
    %v350 = vld [vmem:[#allocation10 + $0xe0] sm:$0xff]
    %v351 = vld [vmem:[#allocation10 + $0xe8] sm:$0xff]
    %v352 = vld [vmem:[#allocation10 + $0xf0] sm:$0xff]
    %v353 = vld [vmem:[#allocation10 + $0xf8] sm:$0xff]
    %v354 = vld [vmem:[%s0] sm:$0xff]
    %s355 = smul.u32 0, 8
    %v356 = vld [vmem:[#allocation2] sm:$0xff]
    %v357 = vld [vmem:[#allocation3] sm:$0xff]
    %v358 = vld [vmem:[#allocation4] sm:$0xff]
    %v359 = vld [vmem:[#allocation4 + $0x8] sm:$0xff]
    %v360 = vld [vmem:[#allocation4 + $0x10] sm:$0xff]
    %v361 = vld [vmem:[#allocation4 + $0x18] sm:$0xff]
    %v362 = vpack.c.bf16 %v356, %v356
    %v395 = vunpack.c.l.b16 %v322
    %v396 = vunpack.c.h.b16 %v322
    %v397 = vunpack.c.l.b16 %v323
    %v398 = vunpack.c.h.b16 %v323
    %v399 = vunpack.c.l.b16 %v324
    %v400 = vunpack.c.h.b16 %v324
    %v401 = vunpack.c.l.b16 %v325
    %v402 = vunpack.c.h.b16 %v325
    %v403 = vunpack.c.l.b16 %v326
    %v404 = vunpack.c.h.b16 %v326
    %v405 = vunpack.c.l.b16 %v327
    %v406 = vunpack.c.h.b16 %v327
    %v407 = vunpack.c.l.b16 %v328
    %v408 = vunpack.c.h.b16 %v328
    %v409 = vunpack.c.l.b16 %v329
    %v410 = vunpack.c.h.b16 %v329
    %v411 = vunpack.c.l.b16 %v330
    %v412 = vunpack.c.h.b16 %v330
    %v413 = vunpack.c.l.b16 %v331
    %v414 = vunpack.c.h.b16 %v331
    %v415 = vunpack.c.l.b16 %v332
    %v416 = vunpack.c.h.b16 %v332
    %v417 = vunpack.c.l.b16 %v333
    %v418 = vunpack.c.h.b16 %v333
    %v419 = vunpack.c.l.b16 %v334
    %v420 = vunpack.c.h.b16 %v334
    %v421 = vunpack.c.l.b16 %v335
    %v422 = vunpack.c.h.b16 %v335
    %v423 = vunpack.c.l.b16 %v336
    %v424 = vunpack.c.h.b16 %v336
    %v425 = vunpack.c.l.b16 %v337
    %v426 = vunpack.c.h.b16 %v337
    %v427 = vunpack.c.l.b16 %v338
    %v428 = vunpack.c.h.b16 %v338
    %v429 = vunpack.c.l.b16 %v339
    %v430 = vunpack.c.h.b16 %v339
    %v431 = vunpack.c.l.b16 %v340
    %v432 = vunpack.c.h.b16 %v340
    %v433 = vunpack.c.l.b16 %v341
    %v434 = vunpack.c.h.b16 %v341
    %v435 = vunpack.c.l.b16 %v342
    %v436 = vunpack.c.h.b16 %v342
    %v437 = vunpack.c.l.b16 %v343
    %v438 = vunpack.c.h.b16 %v343
    %v439 = vunpack.c.l.b16 %v344
    %v440 = vunpack.c.h.b16 %v344
    %v441 = vunpack.c.l.b16 %v345
    %v442 = vunpack.c.h.b16 %v345
    %v443 = vunpack.c.l.b16 %v346
    %v444 = vunpack.c.h.b16 %v346
    %v445 = vunpack.c.l.b16 %v347
    %v446 = vunpack.c.h.b16 %v347
    %v447 = vunpack.c.l.b16 %v348
    %v448 = vunpack.c.h.b16 %v348
    %v449 = vunpack.c.l.b16 %v349
    %v450 = vunpack.c.h.b16 %v349
    %v451 = vunpack.c.l.b16 %v350
    %v452 = vunpack.c.h.b16 %v350
    %v453 = vunpack.c.l.b16 %v351
    %v454 = vunpack.c.h.b16 %v351
    %v455 = vunpack.c.l.b16 %v352
    %v456 = vunpack.c.h.b16 %v352
    %v457 = vunpack.c.l.b16 %v353
    %v458 = vunpack.c.h.b16 %v353
    %v459 = vpack.c.b16 %v399, %v395
    %v460 = vpack.c.b16 %v400, %v396
    %v461 = vpack.c.b16 %v401, %v397
    %v462 = vpack.c.b16 %v402, %v398
    %v463 = vpack.c.b16 %v407, %v403
    %v464 = vpack.c.b16 %v408, %v404
    %v465 = vpack.c.b16 %v409, %v405
    %v466 = vpack.c.b16 %v410, %v406
    %v467 = vpack.c.b16 %v415, %v411
    %v468 = vpack.c.b16 %v416, %v412
    %v469 = vpack.c.b16 %v417, %v413
    %v470 = vpack.c.b16 %v418, %v414
    %v471 = vpack.c.b16 %v423, %v419
    %v472 = vpack.c.b16 %v424, %v420
    %v473 = vpack.c.b16 %v425, %v421
    %v474 = vpack.c.b16 %v426, %v422
    %v475 = vpack.c.b16 %v431, %v427
    %v476 = vpack.c.b16 %v432, %v428
    %v477 = vpack.c.b16 %v433, %v429
    %v478 = vpack.c.b16 %v434, %v430
    %v479 = vpack.c.b16 %v439, %v435
    %v480 = vpack.c.b16 %v440, %v436
    %v481 = vpack.c.b16 %v441, %v437
    %v482 = vpack.c.b16 %v442, %v438
    %v483 = vpack.c.b16 %v447, %v443
    %v484 = vpack.c.b16 %v448, %v444
    %v485 = vpack.c.b16 %v449, %v445
    %v486 = vpack.c.b16 %v450, %v446
    %v487 = vpack.c.b16 %v455, %v451
    %v488 = vpack.c.b16 %v456, %v452
    %v489 = vpack.c.b16 %v457, %v453
    %v490 = vpack.c.b16 %v458, %v454
    %523 = vmatprep.subr.bf16.mxu0 %v460
    %524 = vmatpush1.bf16.msra.mxu0 %v459
    %525 = vmatprep.subr.bf16.mxu0 %v464
    %526 = vmatpush1.bf16.msra.mxu0 %v463
    %527 = vmatprep.subr.bf16.mxu0 %v468
    %528 = vmatpush1.bf16.msra.mxu0 %v467
    %529 = vmatprep.subr.bf16.mxu0 %v472
    %530 = vmatpush1.bf16.msra.mxu0 %v471
    %531 = vmatprep.subr.bf16.mxu0 %v476
    %532 = vmatpush1.bf16.msra.mxu0 %v475
    %533 = vmatprep.subr.bf16.mxu0 %v480
    %534 = vmatpush1.bf16.msra.mxu0 %v479
    %535 = vmatprep.subr.bf16.mxu0 %v484
    %536 = vmatpush1.bf16.msra.mxu0 %v483
    %537 = vmatprep.subr.bf16.mxu0 %v488
    %538 = vmatpush1.bf16.msra.mxu0 %v487
    %539 = vmatprep.subr.bf16.mxu0 0
    %540 = vmatpush1.bf16.msra.mxu0 0
    %541 = vmatprep.subr.bf16.mxu0 0
    %542 = vmatpush1.bf16.msra.mxu0 0
    %543 = vmatprep.subr.bf16.mxu0 0
    %544 = vmatpush1.bf16.msra.mxu0 0
    %545 = vmatprep.subr.bf16.mxu0 0
    %546 = vmatpush1.bf16.msra.mxu0 0
    %547 = vmatprep.subr.bf16.mxu0 0
    %548 = vmatpush1.bf16.msra.mxu0 0
    %549 = vmatprep.subr.bf16.mxu0 0
    %550 = vmatpush1.bf16.msra.mxu0 0
    %551 = vmatprep.subr.bf16.mxu0 0
    %552 = vmatpush1.bf16.msra.mxu0 0
    %553 = vmatprep.subr.bf16.mxu0 0
    %554 = vmatpush1.bf16.msra.mxu0 0
    %555 = vmatprep.mubr.bf16.mxu0 0
    %556 = vmatmul.mubr.bf16.gmra.mrb[0].mxu0 %v362
    %v557 = vpop.f32.mrb[0].mxu0
    %v558 = vadd.f32 0.0, %v557
    %v559 = vpop.f32.mrb[0].mxu0
    %v560 = vadd.f32 0.0, %v559
    %v561 = vpop.f32.mrb[0].mxu0
    %v562 = vpop.f32.mrb[0].mxu0
    %563 = vdwg.mxu0
    %564 = vmatprep.subr.bf16.mxu0 %v462
    %565 = vmatpush1.bf16.msra.mxu0 %v461
    %566 = vmatprep.subr.bf16.mxu0 %v466
    %567 = vmatpush1.bf16.msra.mxu0 %v465
    %568 = vmatprep.subr.bf16.mxu0 %v470
    %569 = vmatpush1.bf16.msra.mxu0 %v469
    %570 = vmatprep.subr.bf16.mxu0 %v474
    %571 = vmatpush1.bf16.msra.mxu0 %v473
    %572 = vmatprep.subr.bf16.mxu0 %v478
    %573 = vmatpush1.bf16.msra.mxu0 %v477
    %574 = vmatprep.subr.bf16.mxu0 %v482
    %575 = vmatpush1.bf16.msra.mxu0 %v481
    %576 = vmatprep.subr.bf16.mxu0 %v486
    %577 = vmatpush1.bf16.msra.mxu0 %v485
    %578 = vmatprep.subr.bf16.mxu0 %v490
    %579 = vmatpush1.bf16.msra.mxu0 %v489
    %580 = vmatprep.subr.bf16.mxu0 0
    %581 = vmatpush1.bf16.msra.mxu0 0
    %582 = vmatprep.subr.bf16.mxu0 0
    %583 = vmatpush1.bf16.msra.mxu0 0
    %584 = vmatprep.subr.bf16.mxu0 0
    %585 = vmatpush1.bf16.msra.mxu0 0
    %586 = vmatprep.subr.bf16.mxu0 0
    %587 = vmatpush1.bf16.msra.mxu0 0
    %588 = vmatprep.subr.bf16.mxu0 0
    %589 = vmatpush1.bf16.msra.mxu0 0
    %590 = vmatprep.subr.bf16.mxu0 0
    %591 = vmatpush1.bf16.msra.mxu0 0
    %592 = vmatprep.subr.bf16.mxu0 0
    %593 = vmatpush1.bf16.msra.mxu0 0
    %594 = vmatprep.subr.bf16.mxu0 0
    %595 = vmatpush1.bf16.msra.mxu0 0
    %596 = vmatprep.mubr.bf16.mxu0 0
    %597 = vmatmul.mubr.bf16.gmra.mrb[0].mxu0 %v362
    %v598 = vpop.f32.mrb[0].mxu0
    %v599 = vadd.f32 0.0, %v598
    %v600 = vpop.f32.mrb[0].mxu0
    %v601 = vadd.f32 0.0, %v600
    %v602 = vpop.f32.mrb[0].mxu0
    %v603 = vpop.f32.mrb[0].mxu0
    %604 = vdwg.mxu0
    %v605 = vadd.f32 %v358, %v558
    %v606 = vadd.f32 %v359, %v560
    %v607 = vadd.f32 %v360, %v599
    %v608 = vadd.f32 %v361, %v601
    %v609 = vxor.u32 %v605, 2147483648
    %v610 = vmul.f32 %v609, 1.442695
    %v611 = vpow.pop %v610
    %v612 = vadd.f32 %v611, 1.0
    %v613 = vrcp.pop %v612
    %v614 = vmul.f32 1.0, %v613
    %v615 = vxor.u32 %v606, 2147483648
    %v616 = vmul.f32 %v615, 1.442695
    %v617 = vpow.pop %v616
    %v618 = vadd.f32 %v617, 1.0
    %v619 = vrcp.pop %v618
    %v620 = vmul.f32 1.0, %v619
    %v621 = vtanh.pop %v607
    %v622 = vxor.u32 %v608, 2147483648
    %v623 = vmul.f32 %v622, 1.442695
    %v624 = vpow.pop %v623
    %v625 = vadd.f32 %v624, 1.0
    %v626 = vrcp.pop %v625
    %v627 = vmul.f32 1.0, %v626
    %v628 = vmul.f32 %v620, %v357
    %v629 = vmul.f32 %v614, %v621
    %v630 = vadd.f32 %v628, %v629
    %v631 = vtanh.pop %v630
    %v632 = vmul.f32 %v627, %v631
    %v633 = vstv %s355
    %vm634 = vcmp.lt.s32.totalorder %v633, %v354
    %v635 = vsel %vm634, 1, 0
    %636 = vset.pattern.permute.xlu0 0
    %637 = vperm.xlu0 %636, %v635
    %v638 = vpop.permute.xlu0 %637
    %vm639 = vcmp.eq.s32.totalorder %v638, 1
    %v640 = vsel %vm639, %v632, %v356
    %641 = vst [vmem:[#allocation2] sm:$0xff] %v640
    %v642 = vsel %vm639, %v630, %v357
    %643 = vst [vmem:[#allocation3] sm:$0xff] %v642
    %v644 = vsel %vm639, %v632, 0.0
    %645 = vst [vmem:[#allocation11] sm:$0xff] %v644
    %v646 = vld [vmem:[#allocation2] sm:$0xff]
    %v647 = vld [vmem:[#allocation3] sm:$0xff]
    %v648 = vld [vmem:[#allocation4 + $0x20] sm:$0xff]
    %v649 = vld [vmem:[#allocation4 + $0x28] sm:$0xff]
    %v650 = vld [vmem:[#allocation4 + $0x30] sm:$0xff]
    %v651 = vld [vmem:[#allocation4 + $0x38] sm:$0xff]
    %v652 = vpack.c.bf16 %v646, %v646
    %653 = vmatprep.subr.bf16.mxu0 %v460
    %654 = vmatpush1.bf16.msra.mxu0 %v459
    %655 = vmatprep.subr.bf16.mxu0 %v464
    %656 = vmatpush1.bf16.msra.mxu0 %v463
    %657 = vmatprep.subr.bf16.mxu0 %v468
    %658 = vmatpush1.bf16.msra.mxu0 %v467
    %659 = vmatprep.subr.bf16.mxu0 %v472
    %660 = vmatpush1.bf16.msra.mxu0 %v471
    %661 = vmatprep.subr.bf16.mxu0 %v476
    %662 = vmatpush1.bf16.msra.mxu0 %v475
    %663 = vmatprep.subr.bf16.mxu0 %v480
    %664 = vmatpush1.bf16.msra.mxu0 %v479
    %665 = vmatprep.subr.bf16.mxu0 %v484
    %666 = vmatpush1.bf16.msra.mxu0 %v483
    %667 = vmatprep.subr.bf16.mxu0 %v488
    %668 = vmatpush1.bf16.msra.mxu0 %v487
    %669 = vmatprep.subr.bf16.mxu0 0
    %670 = vmatpush1.bf16.msra.mxu0 0
    %671 = vmatprep.subr.bf16.mxu0 0
    %672 = vmatpush1.bf16.msra.mxu0 0
    %673 = vmatprep.subr.bf16.mxu0 0
    %674 = vmatpush1.bf16.msra.mxu0 0
    %675 = vmatprep.subr.bf16.mxu0 0
    %676 = vmatpush1.bf16.msra.mxu0 0
    %677 = vmatprep.subr.bf16.mxu0 0
    %678 = vmatpush1.bf16.msra.mxu0 0
    %679 = vmatprep.subr.bf16.mxu0 0
    %680 = vmatpush1.bf16.msra.mxu0 0
    %681 = vmatprep.subr.bf16.mxu0 0
    %682 = vmatpush1.bf16.msra.mxu0 0
    %683 = vmatprep.subr.bf16.mxu0 0
    %684 = vmatpush1.bf16.msra.mxu0 0
    %685 = vmatprep.mubr.bf16.mxu0 0
    %686 = vmatmul.mubr.bf16.gmra.mrb[0].mxu0 %v652
    %v687 = vpop.f32.mrb[0].mxu0
    %v688 = vadd.f32 0.0, %v687
    %v689 = vpop.f32.mrb[0].mxu0
    %v690 = vadd.f32 0.0, %v689
    %v691 = vpop.f32.mrb[0].mxu0
    %v692 = vpop.f32.mrb[0].mxu0
    %693 = vdwg.mxu0
    %694 = vmatprep.subr.bf16.mxu0 %v462
    %695 = vmatpush1.bf16.msra.mxu0 %v461
    %696 = vmatprep.subr.bf16.mxu0 %v466
    %697 = vmatpush1.bf16.msra.mxu0 %v465
    %698 = vmatprep.subr.bf16.mxu0 %v470
    %699 = vmatpush1.bf16.msra.mxu0 %v469
    %700 = vmatprep.subr.bf16.mxu0 %v474
    %701 = vmatpush1.bf16.msra.mxu0 %v473
    %702 = vmatprep.subr.bf16.mxu0 %v478
    %703 = vmatpush1.bf16.msra.mxu0 %v477
    %704 = vmatprep.subr.bf16.mxu0 %v482
    %705 = vmatpush1.bf16.msra.mxu0 %v481
    %706 = vmatprep.subr.bf16.mxu0 %v486
    %707 = vmatpush1.bf16.msra.mxu0 %v485
    %708 = vmatprep.subr.bf16.mxu0 %v490
    %709 = vmatpush1.bf16.msra.mxu0 %v489
    %710 = vmatprep.subr.bf16.mxu0 0
    %711 = vmatpush1.bf16.msra.mxu0 0
    %712 = vmatprep.subr.bf16.mxu0 0
    %713 = vmatpush1.bf16.msra.mxu0 0
    %714 = vmatprep.subr.bf16.mxu0 0
    %715 = vmatpush1.bf16.msra.mxu0 0
    %716 = vmatprep.subr.bf16.mxu0 0
    %717 = vmatpush1.bf16.msra.mxu0 0
    %718 = vmatprep.subr.bf16.mxu0 0
    %719 = vmatpush1.bf16.msra.mxu0 0
    %720 = vmatprep.subr.bf16.mxu0 0
    %721 = vmatpush1.bf16.msra.mxu0 0
    %722 = vmatprep.subr.bf16.mxu0 0
    %723 = vmatpush1.bf16.msra.mxu0 0
    %724 = vmatprep.subr.bf16.mxu0 0
    %725 = vmatpush1.bf16.msra.mxu0 0
    %726 = vmatprep.mubr.bf16.mxu0 0
    %727 = vmatmul.mubr.bf16.gmra.mrb[0].mxu0 %v652
    %v728 = vpop.f32.mrb[0].mxu0
    %v729 = vadd.f32 0.0, %v728
    %v730 = vpop.f32.mrb[0].mxu0
    %v731 = vadd.f32 0.0, %v730
    %v732 = vpop.f32.mrb[0].mxu0
    %v733 = vpop.f32.mrb[0].mxu0
    %734 = vdwg.mxu0
    %v735 = vadd.f32 %v648, %v688
    %v736 = vadd.f32 %v649, %v690
    %v737 = vadd.f32 %v650, %v729
    %v738 = vadd.f32 %v651, %v731
    %v739 = vxor.u32 %v735, 2147483648
    %v740 = vmul.f32 %v739, 1.442695
    %v741 = vpow.pop %v740
    %v742 = vadd.f32 %v741, 1.0
    %v743 = vrcp.pop %v742
    %v744 = vmul.f32 1.0, %v743
    %v745 = vxor.u32 %v736, 2147483648
    %v746 = vmul.f32 %v745, 1.442695
    %v747 = vpow.pop %v746
    %v748 = vadd.f32 %v747, 1.0
    %v749 = vrcp.pop %v748
    %v750 = vmul.f32 1.0, %v749
    %v751 = vtanh.pop %v737
    %v752 = vxor.u32 %v738, 2147483648
    %v753 = vmul.f32 %v752, 1.442695
    %v754 = vpow.pop %v753
    %v755 = vadd.f32 %v754, 1.0
    %v756 = vrcp.pop %v755
    %v757 = vmul.f32 1.0, %v756
    %v758 = vmul.f32 %v750, %v647
    %v759 = vmul.f32 %v744, %v751
    %v760 = vadd.f32 %v758, %v759
    %v761 = vtanh.pop %v760
    %v762 = vmul.f32 %v757, %v761
    %s763 = sadd.s32 %s355, 1
    %v764 = vstv %s763
    %vm765 = vcmp.lt.s32.totalorder %v764, %v354
    %v766 = vsel %vm765, 1, 0
    %767 = vset.pattern.permute.xlu0 0
    %768 = vperm.xlu0 %767, %v766
    %v769 = vpop.permute.xlu0 %768
    %vm770 = vcmp.eq.s32.totalorder %v769, 1
    %v771 = vsel %vm770, %v762, %v646
    %772 = vst [vmem:[#allocation2] sm:$0xff] %v771
    %v773 = vsel %vm770, %v760, %v647
    %774 = vst [vmem:[#allocation3] sm:$0xff] %v773
    %v775 = vsel %vm770, %v762, 0.0
    %s776 = scalar_lea.vmem [#allocation11], 8
    %777 = vst [vmem:[%s776] sm:$0xff] %v775
    %v778 = vld [vmem:[#allocation2] sm:$0xff]
    %v779 = vld [vmem:[#allocation3] sm:$0xff]
    %v780 = vld [vmem:[#allocation4 + $0x40] sm:$0xff]
    %v781 = vld [vmem:[#allocation4 + $0x48] sm:$0xff]
    %v782 = vld [vmem:[#allocation4 + $0x50] sm:$0xff]
    %v783 = vld [vmem:[#allocation4 + $0x58] sm:$0xff]
    %v784 = vpack.c.bf16 %v778, %v778
    %785 = vmatprep.subr.bf16.mxu0 %v460
    %786 = vmatpush1.bf16.msra.mxu0 %v459
    %787 = vmatprep.subr.bf16.mxu0 %v464
    %788 = vmatpush1.bf16.msra.mxu0 %v463
    %789 = vmatprep.subr.bf16.mxu0 %v468
    %790 = vmatpush1.bf16.msra.mxu0 %v467
    %791 = vmatprep.subr.bf16.mxu0 %v472
    %792 = vmatpush1.bf16.msra.mxu0 %v471
    %793 = vmatprep.subr.bf16.mxu0 %v476
    %794 = vmatpush1.bf16.msra.mxu0 %v475
    %795 = vmatprep.subr.bf16.mxu0 %v480
    %796 = vmatpush1.bf16.msra.mxu0 %v479
    %797 = vmatprep.subr.bf16.mxu0 %v484
    %798 = vmatpush1.bf16.msra.mxu0 %v483
    %799 = vmatprep.subr.bf16.mxu0 %v488
    %800 = vmatpush1.bf16.msra.mxu0 %v487
    %801 = vmatprep.subr.bf16.mxu0 0
    %802 = vmatpush1.bf16.msra.mxu0 0
    %803 = vmatprep.subr.bf16.mxu0 0
    %804 = vmatpush1.bf16.msra.mxu0 0
    %805 = vmatprep.subr.bf16.mxu0 0
    %806 = vmatpush1.bf16.msra.mxu0 0
    %807 = vmatprep.subr.bf16.mxu0 0
    %808 = vmatpush1.bf16.msra.mxu0 0
    %809 = vmatprep.subr.bf16.mxu0 0
    %810 = vmatpush1.bf16.msra.mxu0 0
    %811 = vmatprep.subr.bf16.mxu0 0
    %812 = vmatpush1.bf16.msra.mxu0 0
    %813 = vmatprep.subr.bf16.mxu0 0
    %814 = vmatpush1.bf16.msra.mxu0 0
    %815 = vmatprep.subr.bf16.mxu0 0
    %816 = vmatpush1.bf16.msra.mxu0 0
    %817 = vmatprep.mubr.bf16.mxu0 0
    %818 = vmatmul.mubr.bf16.gmra.mrb[0].mxu0 %v784
    %v819 = vpop.f32.mrb[0].mxu0
    %v820 = vadd.f32 0.0, %v819
    %v821 = vpop.f32.mrb[0].mxu0
    %v822 = vadd.f32 0.0, %v821
    %v823 = vpop.f32.mrb[0].mxu0
    %v824 = vpop.f32.mrb[0].mxu0
    %825 = vdwg.mxu0
    %826 = vmatprep.subr.bf16.mxu0 %v462
    %827 = vmatpush1.bf16.msra.mxu0 %v461
    %828 = vmatprep.subr.bf16.mxu0 %v466
    %829 = vmatpush1.bf16.msra.mxu0 %v465
    %830 = vmatprep.subr.bf16.mxu0 %v470
    %831 = vmatpush1.bf16.msra.mxu0 %v469
    %832 = vmatprep.subr.bf16.mxu0 %v474
    %833 = vmatpush1.bf16.msra.mxu0 %v473
    %834 = vmatprep.subr.bf16.mxu0 %v478
    %835 = vmatpush1.bf16.msra.mxu0 %v477
    %836 = vmatprep.subr.bf16.mxu0 %v482
    %837 = vmatpush1.bf16.msra.mxu0 %v481
    %838 = vmatprep.subr.bf16.mxu0 %v486
    %839 = vmatpush1.bf16.msra.mxu0 %v485
    %840 = vmatprep.subr.bf16.mxu0 %v490
    %841 = vmatpush1.bf16.msra.mxu0 %v489
    %842 = vmatprep.subr.bf16.mxu0 0
    %843 = vmatpush1.bf16.msra.mxu0 0
    %844 = vmatprep.subr.bf16.mxu0 0
    %845 = vmatpush1.bf16.msra.mxu0 0
    %846 = vmatprep.subr.bf16.mxu0 0
    %847 = vmatpush1.bf16.msra.mxu0 0
    %848 = vmatprep.subr.bf16.mxu0 0
    %849 = vmatpush1.bf16.msra.mxu0 0
    %850 = vmatprep.subr.bf16.mxu0 0
    %851 = vmatpush1.bf16.msra.mxu0 0
    %852 = vmatprep.subr.bf16.mxu0 0
    %853 = vmatpush1.bf16.msra.mxu0 0
    %854 = vmatprep.subr.bf16.mxu0 0
    %855 = vmatpush1.bf16.msra.mxu0 0
    %856 = vmatprep.subr.bf16.mxu0 0
    %857 = vmatpush1.bf16.msra.mxu0 0
    %858 = vmatprep.mubr.bf16.mxu0 0
    %859 = vmatmul.mubr.bf16.gmra.mrb[0].mxu0 %v784
    %v860 = vpop.f32.mrb[0].mxu0
    %v861 = vadd.f32 0.0, %v860
    %v862 = vpop.f32.mrb[0].mxu0
    %v863 = vadd.f32 0.0, %v862
    %v864 = vpop.f32.mrb[0].mxu0
    %v865 = vpop.f32.mrb[0].mxu0
    %866 = vdwg.mxu0
    %v867 = vadd.f32 %v780, %v820
    %v868 = vadd.f32 %v781, %v822
    %v869 = vadd.f32 %v782, %v861
    %v870 = vadd.f32 %v783, %v863
    %v871 = vxor.u32 %v867, 2147483648
    %v872 = vmul.f32 %v871, 1.442695
    %v873 = vpow.pop %v872
    %v874 = vadd.f32 %v873, 1.0
    %v875 = vrcp.pop %v874
    %v876 = vmul.f32 1.0, %v875
    %v877 = vxor.u32 %v868, 2147483648
    %v878 = vmul.f32 %v877, 1.442695
    %v879 = vpow.pop %v878
    %v880 = vadd.f32 %v879, 1.0
    %v881 = vrcp.pop %v880
    %v882 = vmul.f32 1.0, %v881
    %v883 = vtanh.pop %v869
    %v884 = vxor.u32 %v870, 2147483648
    %v885 = vmul.f32 %v884, 1.442695
    %v886 = vpow.pop %v885
    %v887 = vadd.f32 %v886, 1.0
    %v888 = vrcp.pop %v887
    %v889 = vmul.f32 1.0, %v888
    %v890 = vmul.f32 %v882, %v779
    %v891 = vmul.f32 %v876, %v883
    %v892 = vadd.f32 %v890, %v891
    %v893 = vtanh.pop %v892
    %v894 = vmul.f32 %v889, %v893
    %s895 = sadd.s32 %s355, 2
    %v896 = vstv %s895
    %vm897 = vcmp.lt.s32.totalorder %v896, %v354
    %v898 = vsel %vm897, 1, 0
    %899 = vset.pattern.permute.xlu0 0
    %900 = vperm.xlu0 %899, %v898
    %v901 = vpop.permute.xlu0 %900
    %vm902 = vcmp.eq.s32.totalorder %v901, 1
    %v903 = vsel %vm902, %v894, %v778
    %904 = vst [vmem:[#allocation2] sm:$0xff] %v903
    %v905 = vsel %vm902, %v892, %v779
    %906 = vst [vmem:[#allocation3] sm:$0xff] %v905
    %v907 = vsel %vm902, %v894, 0.0
    %s908 = scalar_lea.vmem [#allocation11], 16
    %909 = vst [vmem:[%s908] sm:$0xff] %v907
    %v910 = vld [vmem:[#allocation2] sm:$0xff]
    %v911 = vld [vmem:[#allocation3] sm:$0xff]
    %v912 = vld [vmem:[#allocation4 + $0x60] sm:$0xff]
    %v913 = vld [vmem:[#allocation4 + $0x68] sm:$0xff]
    %v914 = vld [vmem:[#allocation4 + $0x70] sm:$0xff]
    %v915 = vld [vmem:[#allocation4 + $0x78] sm:$0xff]
    %v916 = vpack.c.bf16 %v910, %v910
    %917 = vmatprep.subr.bf16.mxu0 %v460
    %918 = vmatpush1.bf16.msra.mxu0 %v459
    %919 = vmatprep.subr.bf16.mxu0 %v464
    %920 = vmatpush1.bf16.msra.mxu0 %v463
    %921 = vmatprep.subr.bf16.mxu0 %v468
    %922 = vmatpush1.bf16.msra.mxu0 %v467
    %923 = vmatprep.subr.bf16.mxu0 %v472
    %924 = vmatpush1.bf16.msra.mxu0 %v471
    %925 = vmatprep.subr.bf16.mxu0 %v476
    %926 = vmatpush1.bf16.msra.mxu0 %v475
    %927 = vmatprep.subr.bf16.mxu0 %v480
    %928 = vmatpush1.bf16.msra.mxu0 %v479
    %929 = vmatprep.subr.bf16.mxu0 %v484
    %930 = vmatpush1.bf16.msra.mxu0 %v483
    %931 = vmatprep.subr.bf16.mxu0 %v488
    %932 = vmatpush1.bf16.msra.mxu0 %v487
    %933 = vmatprep.subr.bf16.mxu0 0
    %934 = vmatpush1.bf16.msra.mxu0 0
    %935 = vmatprep.subr.bf16.mxu0 0
    %936 = vmatpush1.bf16.msra.mxu0 0
    %937 = vmatprep.subr.bf16.mxu0 0
    %938 = vmatpush1.bf16.msra.mxu0 0
    %939 = vmatprep.subr.bf16.mxu0 0
    %940 = vmatpush1.bf16.msra.mxu0 0
    %941 = vmatprep.subr.bf16.mxu0 0
    %942 = vmatpush1.bf16.msra.mxu0 0
    %943 = vmatprep.subr.bf16.mxu0 0
    %944 = vmatpush1.bf16.msra.mxu0 0
    %945 = vmatprep.subr.bf16.mxu0 0
    %946 = vmatpush1.bf16.msra.mxu0 0
    %947 = vmatprep.subr.bf16.mxu0 0
    %948 = vmatpush1.bf16.msra.mxu0 0
    %949 = vmatprep.mubr.bf16.mxu0 0
    %950 = vmatmul.mubr.bf16.gmra.mrb[0].mxu0 %v916
    %v951 = vpop.f32.mrb[0].mxu0
    %v952 = vadd.f32 0.0, %v951
    %v953 = vpop.f32.mrb[0].mxu0
    %v954 = vadd.f32 0.0, %v953
    %v955 = vpop.f32.mrb[0].mxu0
    %v956 = vpop.f32.mrb[0].mxu0
    %957 = vdwg.mxu0
    %958 = vmatprep.subr.bf16.mxu0 %v462
    %959 = vmatpush1.bf16.msra.mxu0 %v461
    %960 = vmatprep.subr.bf16.mxu0 %v466
    %961 = vmatpush1.bf16.msra.mxu0 %v465
    %962 = vmatprep.subr.bf16.mxu0 %v470
    %963 = vmatpush1.bf16.msra.mxu0 %v469
    %964 = vmatprep.subr.bf16.mxu0 %v474
    %965 = vmatpush1.bf16.msra.mxu0 %v473
    %966 = vmatprep.subr.bf16.mxu0 %v478
    %967 = vmatpush1.bf16.msra.mxu0 %v477
    %968 = vmatprep.subr.bf16.mxu0 %v482
    %969 = vmatpush1.bf16.msra.mxu0 %v481
    %970 = vmatprep.subr.bf16.mxu0 %v486
    %971 = vmatpush1.bf16.msra.mxu0 %v485
    %972 = vmatprep.subr.bf16.mxu0 %v490
    %973 = vmatpush1.bf16.msra.mxu0 %v489
    %974 = vmatprep.subr.bf16.mxu0 0
    %975 = vmatpush1.bf16.msra.mxu0 0
    %976 = vmatprep.subr.bf16.mxu0 0
    %977 = vmatpush1.bf16.msra.mxu0 0
    %978 = vmatprep.subr.bf16.mxu0 0
    %979 = vmatpush1.bf16.msra.mxu0 0
    %980 = vmatprep.subr.bf16.mxu0 0
    %981 = vmatpush1.bf16.msra.mxu0 0
    %982 = vmatprep.subr.bf16.mxu0 0
    %983 = vmatpush1.bf16.msra.mxu0 0
    %984 = vmatprep.subr.bf16.mxu0 0
    %985 = vmatpush1.bf16.msra.mxu0 0
    %986 = vmatprep.subr.bf16.mxu0 0
    %987 = vmatpush1.bf16.msra.mxu0 0
    %988 = vmatprep.subr.bf16.mxu0 0
    %989 = vmatpush1.bf16.msra.mxu0 0
    %990 = vmatprep.mubr.bf16.mxu0 0
    %991 = vmatmul.mubr.bf16.gmra.mrb[0].mxu0 %v916
    %v992 = vpop.f32.mrb[0].mxu0
    %v993 = vadd.f32 0.0, %v992
    %v994 = vpop.f32.mrb[0].mxu0
    %v995 = vadd.f32 0.0, %v994
    %v996 = vpop.f32.mrb[0].mxu0
    %v997 = vpop.f32.mrb[0].mxu0
    %998 = vdwg.mxu0
    %v999 = vadd.f32 %v912, %v952
    %v1000 = vadd.f32 %v913, %v954
    %v1001 = vadd.f32 %v914, %v993
    %v1002 = vadd.f32 %v915, %v995
    %v1003 = vxor.u32 %v999, 2147483648
    %v1004 = vmul.f32 %v1003, 1.442695
    %v1005 = vpow.pop %v1004
    %v1006 = vadd.f32 %v1005, 1.0
    %v1007 = vrcp.pop %v1006
    %v1008 = vmul.f32 1.0, %v1007
    %v1009 = vxor.u32 %v1000, 2147483648
    %v1010 = vmul.f32 %v1009, 1.442695
    %v1011 = vpow.pop %v1010
    %v1012 = vadd.f32 %v1011, 1.0
    %v1013 = vrcp.pop %v1012
    %v1014 = vmul.f32 1.0, %v1013
    %v1015 = vtanh.pop %v1001
    %v1016 = vxor.u32 %v1002, 2147483648
    %v1017 = vmul.f32 %v1016, 1.442695
    %v1018 = vpow.pop %v1017
    %v1019 = vadd.f32 %v1018, 1.0
    %v1020 = vrcp.pop %v1019
    %v1021 = vmul.f32 1.0, %v1020
    %v1022 = vmul.f32 %v1014, %v911
    %v1023 = vmul.f32 %v1008, %v1015
    %v1024 = vadd.f32 %v1022, %v1023
    %v1025 = vtanh.pop %v1024
    %v1026 = vmul.f32 %v1021, %v1025
    %s1027 = sadd.s32 %s355, 3
    %v1028 = vstv %s1027
    %vm1029 = vcmp.lt.s32.totalorder %v1028, %v354
    %v1030 = vsel %vm1029, 1, 0
    %1031 = vset.pattern.permute.xlu0 0
    %1032 = vperm.xlu0 %1031, %v1030
    %v1033 = vpop.permute.xlu0 %1032
    %vm1034 = vcmp.eq.s32.totalorder %v1033, 1
    %v1035 = vsel %vm1034, %v1026, %v910
    %1036 = vst [vmem:[#allocation2] sm:$0xff] %v1035
    %v1037 = vsel %vm1034, %v1024, %v911
    %1038 = vst [vmem:[#allocation3] sm:$0xff] %v1037
    %v1039 = vsel %vm1034, %v1026, 0.0
    %s1040 = scalar_lea.vmem [#allocation11], 24
    %1041 = vst [vmem:[%s1040] sm:$0xff] %v1039
    %v1042 = vld [vmem:[#allocation2] sm:$0xff]
    %v1043 = vld [vmem:[#allocation3] sm:$0xff]
    %v1044 = vld [vmem:[#allocation4 + $0x80] sm:$0xff]
    %v1045 = vld [vmem:[#allocation4 + $0x88] sm:$0xff]
    %v1046 = vld [vmem:[#allocation4 + $0x90] sm:$0xff]
    %v1047 = vld [vmem:[#allocation4 + $0x98] sm:$0xff]
    %v1048 = vpack.c.bf16 %v1042, %v1042
    %1049 = vmatprep.subr.bf16.mxu0 %v460
    %1050 = vmatpush1.bf16.msra.mxu0 %v459
    %1051 = vmatprep.subr.bf16.mxu0 %v464
    %1052 = vmatpush1.bf16.msra.mxu0 %v463
    %1053 = vmatprep.subr.bf16.mxu0 %v468
    %1054 = vmatpush1.bf16.msra.mxu0 %v467
    %1055 = vmatprep.subr.bf16.mxu0 %v472
    %1056 = vmatpush1.bf16.msra.mxu0 %v471
    %1057 = vmatprep.subr.bf16.mxu0 %v476
    %1058 = vmatpush1.bf16.msra.mxu0 %v475
    %1059 = vmatprep.subr.bf16.mxu0 %v480
    %1060 = vmatpush1.bf16.msra.mxu0 %v479
    %1061 = vmatprep.subr.bf16.mxu0 %v484
    %1062 = vmatpush1.bf16.msra.mxu0 %v483
    %1063 = vmatprep.subr.bf16.mxu0 %v488
    %1064 = vmatpush1.bf16.msra.mxu0 %v487
    %1065 = vmatprep.subr.bf16.mxu0 0
    %1066 = vmatpush1.bf16.msra.mxu0 0
    %1067 = vmatprep.subr.bf16.mxu0 0
    %1068 = vmatpush1.bf16.msra.mxu0 0
    %1069 = vmatprep.subr.bf16.mxu0 0
    %1070 = vmatpush1.bf16.msra.mxu0 0
    %1071 = vmatprep.subr.bf16.mxu0 0
    %1072 = vmatpush1.bf16.msra.mxu0 0
    %1073 = vmatprep.subr.bf16.mxu0 0
    %1074 = vmatpush1.bf16.msra.mxu0 0
    %1075 = vmatprep.subr.bf16.mxu0 0
    %1076 = vmatpush1.bf16.msra.mxu0 0
    %1077 = vmatprep.subr.bf16.mxu0 0
    %1078 = vmatpush1.bf16.msra.mxu0 0
    %1079 = vmatprep.subr.bf16.mxu0 0
    %1080 = vmatpush1.bf16.msra.mxu0 0
    %1081 = vmatprep.mubr.bf16.mxu0 0
    %1082 = vmatmul.mubr.bf16.gmra.mrb[0].mxu0 %v1048
    %v1083 = vpop.f32.mrb[0].mxu0
    %v1084 = vadd.f32 0.0, %v1083
    %v1085 = vpop.f32.mrb[0].mxu0
    %v1086 = vadd.f32 0.0, %v1085
    %v1087 = vpop.f32.mrb[0].mxu0
    %v1088 = vpop.f32.mrb[0].mxu0
    %1089 = vdwg.mxu0
    %1090 = vmatprep.subr.bf16.mxu0 %v462
    %1091 = vmatpush1.bf16.msra.mxu0 %v461
    %1092 = vmatprep.subr.bf16.mxu0 %v466
    %1093 = vmatpush1.bf16.msra.mxu0 %v465
    %1094 = vmatprep.subr.bf16.mxu0 %v470
    %1095 = vmatpush1.bf16.msra.mxu0 %v469
    %1096 = vmatprep.subr.bf16.mxu0 %v474
    %1097 = vmatpush1.bf16.msra.mxu0 %v473
    %1098 = vmatprep.subr.bf16.mxu0 %v478
    %1099 = vmatpush1.bf16.msra.mxu0 %v477
    %1100 = vmatprep.subr.bf16.mxu0 %v482
    %1101 = vmatpush1.bf16.msra.mxu0 %v481
    %1102 = vmatprep.subr.bf16.mxu0 %v486
    %1103 = vmatpush1.bf16.msra.mxu0 %v485
    %1104 = vmatprep.subr.bf16.mxu0 %v490
    %1105 = vmatpush1.bf16.msra.mxu0 %v489
    %1106 = vmatprep.subr.bf16.mxu0 0
    %1107 = vmatpush1.bf16.msra.mxu0 0
    %1108 = vmatprep.subr.bf16.mxu0 0
    %1109 = vmatpush1.bf16.msra.mxu0 0
    %1110 = vmatprep.subr.bf16.mxu0 0
    %1111 = vmatpush1.bf16.msra.mxu0 0
    %1112 = vmatprep.subr.bf16.mxu0 0
    %1113 = vmatpush1.bf16.msra.mxu0 0
    %1114 = vmatprep.subr.bf16.mxu0 0
    %1115 = vmatpush1.bf16.msra.mxu0 0
    %1116 = vmatprep.subr.bf16.mxu0 0
    %1117 = vmatpush1.bf16.msra.mxu0 0
    %1118 = vmatprep.subr.bf16.mxu0 0
    %1119 = vmatpush1.bf16.msra.mxu0 0
    %1120 = vmatprep.subr.bf16.mxu0 0
    %1121 = vmatpush1.bf16.msra.mxu0 0
    %1122 = vmatprep.mubr.bf16.mxu0 0
    %1123 = vmatmul.mubr.bf16.gmra.mrb[0].mxu0 %v1048
    %v1124 = vpop.f32.mrb[0].mxu0
    %v1125 = vadd.f32 0.0, %v1124
    %v1126 = vpop.f32.mrb[0].mxu0
    %v1127 = vadd.f32 0.0, %v1126
    %v1128 = vpop.f32.mrb[0].mxu0
    %v1129 = vpop.f32.mrb[0].mxu0
    %1130 = vdwg.mxu0
    %v1131 = vadd.f32 %v1044, %v1084
    %v1132 = vadd.f32 %v1045, %v1086
    %v1133 = vadd.f32 %v1046, %v1125
    %v1134 = vadd.f32 %v1047, %v1127
    %v1135 = vxor.u32 %v1131, 2147483648
    %v1136 = vmul.f32 %v1135, 1.442695
    %v1137 = vpow.pop %v1136
    %v1138 = vadd.f32 %v1137, 1.0
    %v1139 = vrcp.pop %v1138
    %v1140 = vmul.f32 1.0, %v1139
    %v1141 = vxor.u32 %v1132, 2147483648
    %v1142 = vmul.f32 %v1141, 1.442695
    %v1143 = vpow.pop %v1142
    %v1144 = vadd.f32 %v1143, 1.0
    %v1145 = vrcp.pop %v1144
    %v1146 = vmul.f32 1.0, %v1145
    %v1147 = vtanh.pop %v1133
    %v1148 = vxor.u32 %v1134, 2147483648
    %v1149 = vmul.f32 %v1148, 1.442695
    %v1150 = vpow.pop %v1149
    %v1151 = vadd.f32 %v1150, 1.0
    %v1152 = vrcp.pop %v1151
    %v1153 = vmul.f32 1.0, %v1152
    %v1154 = vmul.f32 %v1146, %v1043
    %v1155 = vmul.f32 %v1140, %v1147
    %v1156 = vadd.f32 %v1154, %v1155
    %v1157 = vtanh.pop %v1156
    %v1158 = vmul.f32 %v1153, %v1157
    %s1159 = sadd.s32 %s355, 4
    %v1160 = vstv %s1159
    %vm1161 = vcmp.lt.s32.totalorder %v1160, %v354
    %v1162 = vsel %vm1161, 1, 0
    %1163 = vset.pattern.permute.xlu0 0
    %1164 = vperm.xlu0 %1163, %v1162
    %v1165 = vpop.permute.xlu0 %1164
    %vm1166 = vcmp.eq.s32.totalorder %v1165, 1
    %v1167 = vsel %vm1166, %v1158, %v1042
    %1168 = vst [vmem:[#allocation2] sm:$0xff] %v1167
    %v1169 = vsel %vm1166, %v1156, %v1043
    %1170 = vst [vmem:[#allocation3] sm:$0xff] %v1169
    %v1171 = vsel %vm1166, %v1158, 0.0
    %s1172 = scalar_lea.vmem [#allocation11], 32
    %1173 = vst [vmem:[%s1172] sm:$0xff] %v1171
    %v1174 = vld [vmem:[#allocation2] sm:$0xff]
    %v1175 = vld [vmem:[#allocation3] sm:$0xff]
    %v1176 = vld [vmem:[#allocation4 + $0xa0] sm:$0xff]
    %v1177 = vld [vmem:[#allocation4 + $0xa8] sm:$0xff]
    %v1178 = vld [vmem:[#allocation4 + $0xb0] sm:$0xff]
    %v1179 = vld [vmem:[#allocation4 + $0xb8] sm:$0xff]
    %v1180 = vpack.c.bf16 %v1174, %v1174
    %1181 = vmatprep.subr.bf16.mxu0 %v460
    %1182 = vmatpush1.bf16.msra.mxu0 %v459
    %1183 = vmatprep.subr.bf16.mxu0 %v464
    %1184 = vmatpush1.bf16.msra.mxu0 %v463
    %1185 = vmatprep.subr.bf16.mxu0 %v468
    %1186 = vmatpush1.bf16.msra.mxu0 %v467
    %1187 = vmatprep.subr.bf16.mxu0 %v472
    %1188 = vmatpush1.bf16.msra.mxu0 %v471
    %1189 = vmatprep.subr.bf16.mxu0 %v476
    %1190 = vmatpush1.bf16.msra.mxu0 %v475
    %1191 = vmatprep.subr.bf16.mxu0 %v480
    %1192 = vmatpush1.bf16.msra.mxu0 %v479
    %1193 = vmatprep.subr.bf16.mxu0 %v484
    %1194 = vmatpush1.bf16.msra.mxu0 %v483
    %1195 = vmatprep.subr.bf16.mxu0 %v488
    %1196 = vmatpush1.bf16.msra.mxu0 %v487
    %1197 = vmatprep.subr.bf16.mxu0 0
    %1198 = vmatpush1.bf16.msra.mxu0 0
    %1199 = vmatprep.subr.bf16.mxu0 0
    %1200 = vmatpush1.bf16.msra.mxu0 0
    %1201 = vmatprep.subr.bf16.mxu0 0
    %1202 = vmatpush1.bf16.msra.mxu0 0
    %1203 = vmatprep.subr.bf16.mxu0 0
    %1204 = vmatpush1.bf16.msra.mxu0 0
    %1205 = vmatprep.subr.bf16.mxu0 0
    %1206 = vmatpush1.bf16.msra.mxu0 0
    %1207 = vmatprep.subr.bf16.mxu0 0
    %1208 = vmatpush1.bf16.msra.mxu0 0
    %1209 = vmatprep.subr.bf16.mxu0 0
    %1210 = vmatpush1.bf16.msra.mxu0 0
    %1211 = vmatprep.subr.bf16.mxu0 0
    %1212 = vmatpush1.bf16.msra.mxu0 0
    %1213 = vmatprep.mubr.bf16.mxu0 0
    %1214 = vmatmul.mubr.bf16.gmra.mrb[0].mxu0 %v1180
    %v1215 = vpop.f32.mrb[0].mxu0
    %v1216 = vadd.f32 0.0, %v1215
    %v1217 = vpop.f32.mrb[0].mxu0
    %v1218 = vadd.f32 0.0, %v1217
    %v1219 = vpop.f32.mrb[0].mxu0
    %v1220 = vpop.f32.mrb[0].mxu0
    %1221 = vdwg.mxu0
    %1222 = vmatprep.subr.bf16.mxu0 %v462
    %1223 = vmatpush1.bf16.msra.mxu0 %v461
    %1224 = vmatprep.subr.bf16.mxu0 %v466
    %1225 = vmatpush1.bf16.msra.mxu0 %v465
    %1226 = vmatprep.subr.bf16.mxu0 %v470
    %1227 = vmatpush1.bf16.msra.mxu0 %v469
    %1228 = vmatprep.subr.bf16.mxu0 %v474
    %1229 = vmatpush1.bf16.msra.mxu0 %v473
    %1230 = vmatprep.subr.bf16.mxu0 %v478
    %1231 = vmatpush1.bf16.msra.mxu0 %v477
    %1232 = vmatprep.subr.bf16.mxu0 %v482
    %1233 = vmatpush1.bf16.msra.mxu0 %v481
    %1234 = vmatprep.subr.bf16.mxu0 %v486
    %1235 = vmatpush1.bf16.msra.mxu0 %v485
    %1236 = vmatprep.subr.bf16.mxu0 %v490
    %1237 = vmatpush1.bf16.msra.mxu0 %v489
    %1238 = vmatprep.subr.bf16.mxu0 0
    %1239 = vmatpush1.bf16.msra.mxu0 0
    %1240 = vmatprep.subr.bf16.mxu0 0
    %1241 = vmatpush1.bf16.msra.mxu0 0
    %1242 = vmatprep.subr.bf16.mxu0 0
    %1243 = vmatpush1.bf16.msra.mxu0 0
    %1244 = vmatprep.subr.bf16.mxu0 0
    %1245 = vmatpush1.bf16.msra.mxu0 0
    %1246 = vmatprep.subr.bf16.mxu0 0
    %1247 = vmatpush1.bf16.msra.mxu0 0
    %1248 = vmatprep.subr.bf16.mxu0 0
    %1249 = vmatpush1.bf16.msra.mxu0 0
    %1250 = vmatprep.subr.bf16.mxu0 0
    %1251 = vmatpush1.bf16.msra.mxu0 0
    %1252 = vmatprep.subr.bf16.mxu0 0
    %1253 = vmatpush1.bf16.msra.mxu0 0
    %1254 = vmatprep.mubr.bf16.mxu0 0
    %1255 = vmatmul.mubr.bf16.gmra.mrb[0].mxu0 %v1180
    %v1256 = vpop.f32.mrb[0].mxu0
    %v1257 = vadd.f32 0.0, %v1256
    %v1258 = vpop.f32.mrb[0].mxu0
    %v1259 = vadd.f32 0.0, %v1258
    %v1260 = vpop.f32.mrb[0].mxu0
    %v1261 = vpop.f32.mrb[0].mxu0
    %1262 = vdwg.mxu0
    %v1263 = vadd.f32 %v1176, %v1216
    %v1264 = vadd.f32 %v1177, %v1218
    %v1265 = vadd.f32 %v1178, %v1257
    %v1266 = vadd.f32 %v1179, %v1259
    %v1267 = vxor.u32 %v1263, 2147483648
    %v1268 = vmul.f32 %v1267, 1.442695
    %v1269 = vpow.pop %v1268
    %v1270 = vadd.f32 %v1269, 1.0
    %v1271 = vrcp.pop %v1270
    %v1272 = vmul.f32 1.0, %v1271
    %v1273 = vxor.u32 %v1264, 2147483648
    %v1274 = vmul.f32 %v1273, 1.442695
    %v1275 = vpow.pop %v1274
    %v1276 = vadd.f32 %v1275, 1.0
    %v1277 = vrcp.pop %v1276
    %v1278 = vmul.f32 1.0, %v1277
    %v1279 = vtanh.pop %v1265
    %v1280 = vxor.u32 %v1266, 2147483648
    %v1281 = vmul.f32 %v1280, 1.442695
    %v1282 = vpow.pop %v1281
    %v1283 = vadd.f32 %v1282, 1.0
    %v1284 = vrcp.pop %v1283
    %v1285 = vmul.f32 1.0, %v1284
    %v1286 = vmul.f32 %v1278, %v1175
    %v1287 = vmul.f32 %v1272, %v1279
    %v1288 = vadd.f32 %v1286, %v1287
    %v1289 = vtanh.pop %v1288
    %v1290 = vmul.f32 %v1285, %v1289
    %s1291 = sadd.s32 %s355, 5
    %v1292 = vstv %s1291
    %vm1293 = vcmp.lt.s32.totalorder %v1292, %v354
    %v1294 = vsel %vm1293, 1, 0
    %1295 = vset.pattern.permute.xlu0 0
    %1296 = vperm.xlu0 %1295, %v1294
    %v1297 = vpop.permute.xlu0 %1296
    %vm1298 = vcmp.eq.s32.totalorder %v1297, 1
    %v1299 = vsel %vm1298, %v1290, %v1174
    %1300 = vst [vmem:[#allocation2] sm:$0xff] %v1299
    %v1301 = vsel %vm1298, %v1288, %v1175
    %1302 = vst [vmem:[#allocation3] sm:$0xff] %v1301
    %v1303 = vsel %vm1298, %v1290, 0.0
    %s1304 = scalar_lea.vmem [#allocation11], 40
    %1305 = vst [vmem:[%s1304] sm:$0xff] %v1303
    %v1306 = vld [vmem:[#allocation2] sm:$0xff]
    %v1307 = vld [vmem:[#allocation3] sm:$0xff]
    %v1308 = vld [vmem:[#allocation4 + $0xc0] sm:$0xff]
    %v1309 = vld [vmem:[#allocation4 + $0xc8] sm:$0xff]
    %v1310 = vld [vmem:[#allocation4 + $0xd0] sm:$0xff]
    %v1311 = vld [vmem:[#allocation4 + $0xd8] sm:$0xff]
    %v1312 = vpack.c.bf16 %v1306, %v1306
    %1313 = vmatprep.subr.bf16.mxu0 %v460
    %1314 = vmatpush1.bf16.msra.mxu0 %v459
    %1315 = vmatprep.subr.bf16.mxu0 %v464
    %1316 = vmatpush1.bf16.msra.mxu0 %v463
    %1317 = vmatprep.subr.bf16.mxu0 %v468
    %1318 = vmatpush1.bf16.msra.mxu0 %v467
    %1319 = vmatprep.subr.bf16.mxu0 %v472
    %1320 = vmatpush1.bf16.msra.mxu0 %v471
    %1321 = vmatprep.subr.bf16.mxu0 %v476
    %1322 = vmatpush1.bf16.msra.mxu0 %v475
    %1323 = vmatprep.subr.bf16.mxu0 %v480
    %1324 = vmatpush1.bf16.msra.mxu0 %v479
    %1325 = vmatprep.subr.bf16.mxu0 %v484
    %1326 = vmatpush1.bf16.msra.mxu0 %v483
    %1327 = vmatprep.subr.bf16.mxu0 %v488
    %1328 = vmatpush1.bf16.msra.mxu0 %v487
    %1329 = vmatprep.subr.bf16.mxu0 0
    %1330 = vmatpush1.bf16.msra.mxu0 0
    %1331 = vmatprep.subr.bf16.mxu0 0
    %1332 = vmatpush1.bf16.msra.mxu0 0
    %1333 = vmatprep.subr.bf16.mxu0 0
    %1334 = vmatpush1.bf16.msra.mxu0 0
    %1335 = vmatprep.subr.bf16.mxu0 0
    %1336 = vmatpush1.bf16.msra.mxu0 0
    %1337 = vmatprep.subr.bf16.mxu0 0
    %1338 = vmatpush1.bf16.msra.mxu0 0
    %1339 = vmatprep.subr.bf16.mxu0 0
    %1340 = vmatpush1.bf16.msra.mxu0 0
    %1341 = vmatprep.subr.bf16.mxu0 0
    %1342 = vmatpush1.bf16.msra.mxu0 0
    %1343 = vmatprep.subr.bf16.mxu0 0
    %1344 = vmatpush1.bf16.msra.mxu0 0
    %1345 = vmatprep.mubr.bf16.mxu0 0
    %1346 = vmatmul.mubr.bf16.gmra.mrb[0].mxu0 %v1312
    %v1347 = vpop.f32.mrb[0].mxu0
    %v1348 = vadd.f32 0.0, %v1347
    %v1349 = vpop.f32.mrb[0].mxu0
    %v1350 = vadd.f32 0.0, %v1349
    %v1351 = vpop.f32.mrb[0].mxu0
    %v1352 = vpop.f32.mrb[0].mxu0
    %1353 = vdwg.mxu0
    %1354 = vmatprep.subr.bf16.mxu0 %v462
    %1355 = vmatpush1.bf16.msra.mxu0 %v461
    %1356 = vmatprep.subr.bf16.mxu0 %v466
    %1357 = vmatpush1.bf16.msra.mxu0 %v465
    %1358 = vmatprep.subr.bf16.mxu0 %v470
    %1359 = vmatpush1.bf16.msra.mxu0 %v469
    %1360 = vmatprep.subr.bf16.mxu0 %v474
    %1361 = vmatpush1.bf16.msra.mxu0 %v473
    %1362 = vmatprep.subr.bf16.mxu0 %v478
    %1363 = vmatpush1.bf16.msra.mxu0 %v477
    %1364 = vmatprep.subr.bf16.mxu0 %v482
    %1365 = vmatpush1.bf16.msra.mxu0 %v481
    %1366 = vmatprep.subr.bf16.mxu0 %v486
    %1367 = vmatpush1.bf16.msra.mxu0 %v485
    %1368 = vmatprep.subr.bf16.mxu0 %v490
    %1369 = vmatpush1.bf16.msra.mxu0 %v489
    %1370 = vmatprep.subr.bf16.mxu0 0
    %1371 = vmatpush1.bf16.msra.mxu0 0
    %1372 = vmatprep.subr.bf16.mxu0 0
    %1373 = vmatpush1.bf16.msra.mxu0 0
    %1374 = vmatprep.subr.bf16.mxu0 0
    %1375 = vmatpush1.bf16.msra.mxu0 0
    %1376 = vmatprep.subr.bf16.mxu0 0
    %1377 = vmatpush1.bf16.msra.mxu0 0
    %1378 = vmatprep.subr.bf16.mxu0 0
    %1379 = vmatpush1.bf16.msra.mxu0 0
    %1380 = vmatprep.subr.bf16.mxu0 0
    %1381 = vmatpush1.bf16.msra.mxu0 0
    %1382 = vmatprep.subr.bf16.mxu0 0
    %1383 = vmatpush1.bf16.msra.mxu0 0
    %1384 = vmatprep.subr.bf16.mxu0 0
    %1385 = vmatpush1.bf16.msra.mxu0 0
    %1386 = vmatprep.mubr.bf16.mxu0 0
    %1387 = vmatmul.mubr.bf16.gmra.mrb[0].mxu0 %v1312
    %v1388 = vpop.f32.mrb[0].mxu0
    %v1389 = vadd.f32 0.0, %v1388
    %v1390 = vpop.f32.mrb[0].mxu0
    %v1391 = vadd.f32 0.0, %v1390
    %v1392 = vpop.f32.mrb[0].mxu0
    %v1393 = vpop.f32.mrb[0].mxu0
    %1394 = vdwg.mxu0
    %v1395 = vadd.f32 %v1308, %v1348
    %v1396 = vadd.f32 %v1309, %v1350
    %v1397 = vadd.f32 %v1310, %v1389
    %v1398 = vadd.f32 %v1311, %v1391
    %v1399 = vxor.u32 %v1395, 2147483648
    %v1400 = vmul.f32 %v1399, 1.442695
    %v1401 = vpow.pop %v1400
    %v1402 = vadd.f32 %v1401, 1.0
    %v1403 = vrcp.pop %v1402
    %v1404 = vmul.f32 1.0, %v1403
    %v1405 = vxor.u32 %v1396, 2147483648
    %v1406 = vmul.f32 %v1405, 1.442695
    %v1407 = vpow.pop %v1406
    %v1408 = vadd.f32 %v1407, 1.0
    %v1409 = vrcp.pop %v1408
    %v1410 = vmul.f32 1.0, %v1409
    %v1411 = vtanh.pop %v1397
    %v1412 = vxor.u32 %v1398, 2147483648
    %v1413 = vmul.f32 %v1412, 1.442695
    %v1414 = vpow.pop %v1413
    %v1415 = vadd.f32 %v1414, 1.0
    %v1416 = vrcp.pop %v1415
    %v1417 = vmul.f32 1.0, %v1416
    %v1418 = vmul.f32 %v1410, %v1307
    %v1419 = vmul.f32 %v1404, %v1411
    %v1420 = vadd.f32 %v1418, %v1419
    %v1421 = vtanh.pop %v1420
    %v1422 = vmul.f32 %v1417, %v1421
    %s1423 = sadd.s32 %s355, 6
    %v1424 = vstv %s1423
    %vm1425 = vcmp.lt.s32.totalorder %v1424, %v354
    %v1426 = vsel %vm1425, 1, 0
    %1427 = vset.pattern.permute.xlu0 0
    %1428 = vperm.xlu0 %1427, %v1426
    %v1429 = vpop.permute.xlu0 %1428
    %vm1430 = vcmp.eq.s32.totalorder %v1429, 1
    %v1431 = vsel %vm1430, %v1422, %v1306
    %1432 = vst [vmem:[#allocation2] sm:$0xff] %v1431
    %v1433 = vsel %vm1430, %v1420, %v1307
    %1434 = vst [vmem:[#allocation3] sm:$0xff] %v1433
    %v1435 = vsel %vm1430, %v1422, 0.0
    %s1436 = scalar_lea.vmem [#allocation11], 48
    %1437 = vst [vmem:[%s1436] sm:$0xff] %v1435
    %v1438 = vld [vmem:[#allocation2] sm:$0xff]
    %v1439 = vld [vmem:[#allocation3] sm:$0xff]
    %v1440 = vld [vmem:[#allocation4 + $0xe0] sm:$0xff]
    %v1441 = vld [vmem:[#allocation4 + $0xe8] sm:$0xff]
    %v1442 = vld [vmem:[#allocation4 + $0xf0] sm:$0xff]
    %v1443 = vld [vmem:[#allocation4 + $0xf8] sm:$0xff]
    %v1444 = vpack.c.bf16 %v1438, %v1438
    %1445 = vmatprep.subr.bf16.mxu0 %v460
    %1446 = vmatpush1.bf16.msra.mxu0 %v459
    %1447 = vmatprep.subr.bf16.mxu0 %v464
    %1448 = vmatpush1.bf16.msra.mxu0 %v463
    %1449 = vmatprep.subr.bf16.mxu0 %v468
    %1450 = vmatpush1.bf16.msra.mxu0 %v467
    %1451 = vmatprep.subr.bf16.mxu0 %v472
    %1452 = vmatpush1.bf16.msra.mxu0 %v471
    %1453 = vmatprep.subr.bf16.mxu0 %v476
    %1454 = vmatpush1.bf16.msra.mxu0 %v475
    %1455 = vmatprep.subr.bf16.mxu0 %v480
    %1456 = vmatpush1.bf16.msra.mxu0 %v479
    %1457 = vmatprep.subr.bf16.mxu0 %v484
    %1458 = vmatpush1.bf16.msra.mxu0 %v483
    %1459 = vmatprep.subr.bf16.mxu0 %v488
    %1460 = vmatpush1.bf16.msra.mxu0 %v487
    %1461 = vmatprep.subr.bf16.mxu0 0
    %1462 = vmatpush1.bf16.msra.mxu0 0
    %1463 = vmatprep.subr.bf16.mxu0 0
    %1464 = vmatpush1.bf16.msra.mxu0 0
    %1465 = vmatprep.subr.bf16.mxu0 0
    %1466 = vmatpush1.bf16.msra.mxu0 0
    %1467 = vmatprep.subr.bf16.mxu0 0
    %1468 = vmatpush1.bf16.msra.mxu0 0
    %1469 = vmatprep.subr.bf16.mxu0 0
    %1470 = vmatpush1.bf16.msra.mxu0 0
    %1471 = vmatprep.subr.bf16.mxu0 0
    %1472 = vmatpush1.bf16.msra.mxu0 0
    %1473 = vmatprep.subr.bf16.mxu0 0
    %1474 = vmatpush1.bf16.msra.mxu0 0
    %1475 = vmatprep.subr.bf16.mxu0 0
    %1476 = vmatpush1.bf16.msra.mxu0 0
    %1477 = vmatprep.mubr.bf16.mxu0 0
    %1478 = vmatmul.mubr.bf16.gmra.mrb[0].mxu0 %v1444
    %v1479 = vpop.f32.mrb[0].mxu0
    %v1480 = vadd.f32 0.0, %v1479
    %v1481 = vpop.f32.mrb[0].mxu0
    %v1482 = vadd.f32 0.0, %v1481
    %v1483 = vpop.f32.mrb[0].mxu0
    %v1484 = vpop.f32.mrb[0].mxu0
    %1485 = vdwg.mxu0
    %1486 = vmatprep.subr.bf16.mxu0 %v462
    %1487 = vmatpush1.bf16.msra.mxu0 %v461
    %1488 = vmatprep.subr.bf16.mxu0 %v466
    %1489 = vmatpush1.bf16.msra.mxu0 %v465
    %1490 = vmatprep.subr.bf16.mxu0 %v470
    %1491 = vmatpush1.bf16.msra.mxu0 %v469
    %1492 = vmatprep.subr.bf16.mxu0 %v474
    %1493 = vmatpush1.bf16.msra.mxu0 %v473
    %1494 = vmatprep.subr.bf16.mxu0 %v478
    %1495 = vmatpush1.bf16.msra.mxu0 %v477
    %1496 = vmatprep.subr.bf16.mxu0 %v482
    %1497 = vmatpush1.bf16.msra.mxu0 %v481
    %1498 = vmatprep.subr.bf16.mxu0 %v486
    %1499 = vmatpush1.bf16.msra.mxu0 %v485
    %1500 = vmatprep.subr.bf16.mxu0 %v490
    %1501 = vmatpush1.bf16.msra.mxu0 %v489
    %1502 = vmatprep.subr.bf16.mxu0 0
    %1503 = vmatpush1.bf16.msra.mxu0 0
    %1504 = vmatprep.subr.bf16.mxu0 0
    %1505 = vmatpush1.bf16.msra.mxu0 0
    %1506 = vmatprep.subr.bf16.mxu0 0
    %1507 = vmatpush1.bf16.msra.mxu0 0
    %1508 = vmatprep.subr.bf16.mxu0 0
    %1509 = vmatpush1.bf16.msra.mxu0 0
    %1510 = vmatprep.subr.bf16.mxu0 0
    %1511 = vmatpush1.bf16.msra.mxu0 0
    %1512 = vmatprep.subr.bf16.mxu0 0
    %1513 = vmatpush1.bf16.msra.mxu0 0
    %1514 = vmatprep.subr.bf16.mxu0 0
    %1515 = vmatpush1.bf16.msra.mxu0 0
    %1516 = vmatprep.subr.bf16.mxu0 0
    %1517 = vmatpush1.bf16.msra.mxu0 0
    %1518 = vmatprep.mubr.bf16.mxu0 0
    %1519 = vmatmul.mubr.bf16.gmra.mrb[0].mxu0 %v1444
    %v1520 = vpop.f32.mrb[0].mxu0
    %v1521 = vadd.f32 0.0, %v1520
    %v1522 = vpop.f32.mrb[0].mxu0
    %v1523 = vadd.f32 0.0, %v1522
    %v1524 = vpop.f32.mrb[0].mxu0
    %v1525 = vpop.f32.mrb[0].mxu0
    %1526 = vdwg.mxu0
    %v1527 = vadd.f32 %v1440, %v1480
    %v1528 = vadd.f32 %v1441, %v1482
    %v1529 = vadd.f32 %v1442, %v1521
    %v1530 = vadd.f32 %v1443, %v1523
    %v1531 = vxor.u32 %v1527, 2147483648
    %v1532 = vmul.f32 %v1531, 1.442695
    %v1533 = vpow.pop %v1532
    %v1534 = vadd.f32 %v1533, 1.0
    %v1535 = vrcp.pop %v1534
    %v1536 = vmul.f32 1.0, %v1535
    %v1537 = vxor.u32 %v1528, 2147483648
    %v1538 = vmul.f32 %v1537, 1.442695
    %v1539 = vpow.pop %v1538
    %v1540 = vadd.f32 %v1539, 1.0
    %v1541 = vrcp.pop %v1540
    %v1542 = vmul.f32 1.0, %v1541
    %v1543 = vtanh.pop %v1529
    %v1544 = vxor.u32 %v1530, 2147483648
    %v1545 = vmul.f32 %v1544, 1.442695
    %v1546 = vpow.pop %v1545
    %v1547 = vadd.f32 %v1546, 1.0
    %v1548 = vrcp.pop %v1547
    %v1549 = vmul.f32 1.0, %v1548
    %v1550 = vmul.f32 %v1542, %v1439
    %v1551 = vmul.f32 %v1536, %v1543
    %v1552 = vadd.f32 %v1550, %v1551
    %v1553 = vtanh.pop %v1552
    %v1554 = vmul.f32 %v1549, %v1553
    %s1555 = sadd.s32 %s355, 7
    %v1556 = vstv %s1555
    %vm1557 = vcmp.lt.s32.totalorder %v1556, %v354
    %v1558 = vsel %vm1557, 1, 0
    %1559 = vset.pattern.permute.xlu0 0
    %1560 = vperm.xlu0 %1559, %v1558
    %v1561 = vpop.permute.xlu0 %1560
    %vm1562 = vcmp.eq.s32.totalorder %v1561, 1
    %v1563 = vsel %vm1562, %v1554, %v1438
    %1564 = vst [vmem:[#allocation2] sm:$0xff] %v1563
    %v1565 = vsel %vm1562, %v1552, %v1439
    %1566 = vst [vmem:[#allocation3] sm:$0xff] %v1565
    %v1567 = vsel %vm1562, %v1554, 0.0
    %s1568 = scalar_lea.vmem [#allocation11], 56
    %1569 = vst [vmem:[%s1568] sm:$0xff] %v1567
    // Predicated region
    $region38: #{tpu_custom_call.1} parent=1 // pred_check
      %p1570 = pneg %p67
    $region39: #{tpu_custom_call.1} parent=1 // pred_check_branch
      %1572 = sbr.rel (%p1570) target = $region41
    $region40: #{tpu_custom_call.1} parent=1 // pred_region
      %v1573 = vld [vmem:[#allocation2] sm:$0xff]
      %1574 = vst [vmem:[#allocation12] sm:$0xff] %v1573
      %v1575 = vld [vmem:[#allocation3] sm:$0xff]
      %1576 = vst [vmem:[#allocation14] sm:$0xff] %v1575
    $region41: #{tpu_custom_call.1} parent=1 // pred_fallthru
      _
    // Predicated region
    $region42: #{tpu_custom_call.1} parent=1 // pred_check
      _
    $region43: #{tpu_custom_call.1} parent=1 // pred_check_branch
      %1578 = sbr.rel (0) target = $region45
    $region44: #{tpu_custom_call.1} parent=1 // pred_region
      %s1580 = ssub.s32 1024, 1024
      %1581 = vsyncadd [#allocation7], %s1580
      %s1582 = sshll.u32 [#allocation11], 4
      %s1583 = int_to_ptr.vmem [resolvable:$true] %s1582
      %1588 = dma.vmem_to_hbm [thread:$0]  %s1583, 1024, %s5, [#allocation7], 128, 128, 8
    $region45: #{tpu_custom_call.1} parent=1 // pred_fallthru
      _
    // Predicated region
    $region46: #{tpu_custom_call.1} parent=1 // pred_check
      _
    $region47: #{tpu_custom_call.1} parent=1 // pred_check_branch
      %1590 = sbr.rel (0) target = $region49
    $region48: #{tpu_custom_call.1} parent=1 // pred_region
      %s1592 = ssub.s32 128, 128
      %1593 = vsyncadd [#allocation13], %s1592
      %s1595 = sshll.u32 [#allocation12], 4
      %s1596 = int_to_ptr.vmem [resolvable:$true] %s1595
      %1598 = dma.vmem_to_hbm [thread:$0]  %s1596, 128, %s6, [#allocation13]
    $region49: #{tpu_custom_call.1} parent=1 // pred_fallthru
      _
    // Predicated region
    $region50: #{tpu_custom_call.1} parent=1 // pred_check
      _
    $region51: #{tpu_custom_call.1} parent=1 // pred_check_branch
      %1600 = sbr.rel (0) target = $region53
    $region52: #{tpu_custom_call.1} parent=1 // pred_region
      %s1602 = ssub.s32 128, 128
      %1603 = vsyncadd [#allocation13], %s1602
      %s1605 = sshll.u32 [#allocation14], 4
      %s1606 = int_to_ptr.vmem [resolvable:$true] %s1605
      %1608 = dma.vmem_to_hbm [thread:$0]  %s1606, 128, %s7, [#allocation13]
    $region53: #{tpu_custom_call.1} parent=1 // pred_fallthru
      _
    // Predicated region
    $region54: #{tpu_custom_call.1} parent=1 // pred_check
      _
    $region55: #{tpu_custom_call.1} parent=1 // pred_check_branch
      %1610 = sbr.rel (0) target = $region57
    $region56: #{tpu_custom_call.1} parent=1 // pred_region
      %1611 = dma.done [#allocation7], 1024
    $region57: #{tpu_custom_call.1} parent=1 // pred_fallthru
      _
    // Predicated region
    $region58: #{tpu_custom_call.1} parent=1 // pred_check
      _
    $region59: #{tpu_custom_call.1} parent=1 // pred_check_branch
      %1613 = sbr.rel (0) target = $region61
    $region60: #{tpu_custom_call.1} parent=1 // pred_region
      %1614 = dma.done [#allocation13], 128
    $region61: #{tpu_custom_call.1} parent=1 // pred_fallthru
      _
    // Predicated region
    $region62: #{tpu_custom_call.1} parent=1 // pred_check
      _
    $region63: #{tpu_custom_call.1} parent=1 // pred_check_branch
      %1616 = sbr.rel (0) target = $region65
    $region64: #{tpu_custom_call.1} parent=1 // pred_region
      %1617 = dma.done [#allocation13], 128
    $region65: #{tpu_custom_call.1} parent=1 // pred_fallthru
      _
    %1618 = vsyncpa [#allocation6], 1
    %1619 = vsyncpa [#allocation9], 1
    %1620 = vsyncpa [#allocation7], 1
    %1621 = vsyncpa [#allocation13], 1

</llo_original>
